<compile_context>
chip_gen: v7x
topology: tpu7x:2x2x1
jax: 0.10.0
libtpu: 0.0.40
codegen_flags: <defaults>
</compile_context>

<pallas_src>
import functools

import jax
import jax.numpy as jnp
from jax.experimental import pallas as pl
from jax.experimental.pallas import tpu as pltpu


def _layernorm(v, gamma, beta, eps=1e-5):
    # f32 LayerNorm (matches the FP16-safe LayerNorm subclass: compute in f32).
    mu = jnp.mean(v, axis=-1, keepdims=True)
    var = jnp.mean((v - mu) ** 2, axis=-1, keepdims=True)
    return (v - mu) * jax.lax.rsqrt(var + eps) * gamma + beta


def _quick_gelu(v):
    # QuickGELU: x * sigmoid(1.702 * x)
    return v * jax.nn.sigmoid(1.702 * v)


def _swap_leading(x, eq):
    # (a, b, minor) -> (b, a, minor).  pltpu.einshape is the lane-layout-aware path;
    # jnp.transpose is the fallback for jax versions without it.
    if hasattr(pltpu, "einshape"):
        try:
            return pltpu.einshape(eq, x)
        except Exception:  # pragma: no cover - defensive version fallback
            pass
    return jnp.transpose(x, (1, 0, 2))


# --------------------------------------------------------------------------------------
# Kernel 1: attention branch  y = x + out_proj(MHA(ln1(x)))
# --------------------------------------------------------------------------------------
def _attn_kernel(x_ref, ln1_g_ref, ln1_b_ref, w_qkv_ref, b_qkv_ref,
                 w_out_ref, b_out_ref, *rest, n_head: int):
    if len(rest) == 2:
        mask_ref, o_ref = rest
    else:
        (o_ref,) = rest
        mask_ref = None

    x = x_ref[...].astype(jnp.float32)                     # (L, D), batch dim squeezed
    L, D = x.shape
    hd = D // n_head

    x_ln = _layernorm(x, ln1_g_ref[...], ln1_b_ref[...])

    # Fused QKV projection: one lane-dense (L,D)@(D,3D) MXU matmul, f32 accumulation,
    # bias added on the f32 accumulator.  1/sqrt(hd) is pre-folded into the Q columns.
    qkv = jnp.dot(x_ln.astype(jnp.bfloat16), w_qkv_ref[...],
                  preferred_element_type=jnp.float32) + b_qkv_ref[...]      # (L, 3D)

    # Single head-batching relayout (replaces 3*H sub-lane column slices + stack).
    qkv_h = _swap_leading(
        qkv.astype(jnp.bfloat16).reshape(L, 3 * n_head, hd), "lgd->gld")    # (3H, L, hd)
    q = qkv_h[:n_head]
    k = qkv_h[n_head:2 * n_head]
    v = qkv_h[2 * n_head:]

    # Batched per-head attention on the MXU (standard flash-style contractions).
    s = jnp.einsum("hqd,hkd->hqk", q, k,
                   preferred_element_type=jnp.float32)                      # (H, L, L)
    if mask_ref is not None:
        s = s + mask_ref[...]                                               # (L, L) bcast
    s = s - jnp.max(s, axis=-1, keepdims=True)
    p = jnp.exp(s)
    # approx reciprocal: EUP slot, ~1e-3 rel. error -- fine for inference tolerances.
    p = p * pl.reciprocal(jnp.sum(p, axis=-1, keepdims=True), approx=True)

    ctx = jnp.einsum("hqk,hkd->hqd", p.astype(jnp.bfloat16), v,
                     preferred_element_type=jnp.float32)                    # (H, L, hd)

    # Re-assemble the head-concat (L, D) tile and do ONE full-depth output projection:
    # the head reduction accumulates inside the MXU (no (H, L, D) f32 buffer, no VPU sum).
    ctx_ld = _swap_leading(ctx.astype(jnp.bfloat16), "hld->lhd").reshape(L, D)
    attn = jnp.dot(ctx_ld, w_out_ref[...],
                   preferred_element_type=jnp.float32) + b_out_ref[...]

    o_ref[...] = (x + attn).astype(o_ref.dtype)


# --------------------------------------------------------------------------------------
# Kernel 2: MLP branch  z = y + c_proj(QuickGELU(c_fc(ln2(y)))), tiled over token rows
# --------------------------------------------------------------------------------------
def _mlp_kernel(x_ref, ln2_g_ref, ln2_b_ref, w_fc_ref, b_fc_ref,
                w_proj_ref, b_proj_ref, o_ref):
    x = x_ref[...].astype(jnp.float32)                                      # (TM, D)
    x_ln = _layernorm(x, ln2_g_ref[...], ln2_b_ref[...])
    h = jnp.dot(x_ln.astype(jnp.bfloat16), w_fc_ref[...],
                preferred_element_type=jnp.float32) + b_fc_ref[...]         # (TM, 4D)
    h = _quick_gelu(h)
    y = jnp.dot(h.astype(jnp.bfloat16), w_proj_ref[...],
                preferred_element_type=jnp.float32) + b_proj_ref[...]       # (TM, D)
    o_ref[...] = (x + y).astype(o_ref.dtype)


# --------------------------------------------------------------------------------------
# Wrapper: host-side parameter re-layout + the two pallas_calls
# --------------------------------------------------------------------------------------
def _const_spec(shape):
    # Whole-array block at a constant block index (stays resident across the grid).
    # Buffered(1): constant-index blocks are fetched once, no need to double-buffer.
    index_map = lambda *args, _n=len(shape): (0,) * _n
    if hasattr(pl, "Buffered"):
        try:
            return pl.BlockSpec(shape, index_map, pipeline_mode=pl.Buffered(1))
        except TypeError:  # older BlockSpec without pipeline_mode
            pass
    return pl.BlockSpec(shape, index_map)


def _default_vmem_limit():
    # ~3/4 of the chip's VMEM (96 MiB on v5e/v6e, 48 MiB on v7x) -- leaves headroom for
    # Mosaic internal scratch / semaphores instead of requesting the whole thing.
    try:
        cap = getattr(pltpu.get_tpu_info(), "vmem_capacity_bytes", None)
    except Exception:
        cap = None
    if not cap:
        return 48 * 1024 * 1024
    return int(cap) * 3 // 4


def residual_attention_block(x, params, n_head, attn_mask=None, *,
                             row_tile=None, vmem_limit_bytes=None):
    B, L, D = x.shape
    assert D % n_head == 0
    hd = D // n_head
    scale = 1.0 / float(hd) ** 0.5

    if vmem_limit_bytes is None:
        vmem_limit_bytes = _default_vmem_limit()
    if row_tile is None:
        # bigger tiles amortize per-step overhead when the VMEM budget allows it
        row_tile = 512 if vmem_limit_bytes >= 80 * 1024 * 1024 else 256

    # ---- one-time parameter re-layout (outside the kernels) ---------------------------
    w_qkv = params["w_qkv"].astype(jnp.float32)                 # (3D, D) PyTorch layout
    b_qkv = params["b_qkv"].reshape(3 * D).astype(jnp.float32)
    # fold 1/sqrt(head_dim) into the Q rows of in_proj weight / bias
    q_row_scale = jnp.concatenate(
        [jnp.full((D,), scale, jnp.float32), jnp.ones((2 * D,), jnp.float32)])
    w_qkv = w_qkv * q_row_scale[:, None]
    b_qkv = (b_qkv * q_row_scale).reshape(1, 3 * D)
    w_qkv_t = w_qkv.T.astype(jnp.bfloat16)                      # (D, 3D), NN layout

    # out_proj: out = concat(heads) @ W^T  -> store W^T (D, D), rows = h*hd + e
    w_out_t = params["w_out"].astype(jnp.float32).T.astype(jnp.bfloat16)    # (D, D)
    b_out = params["b_out"].reshape(1, D).astype(jnp.float32)

    w_fc_t = params["w_fc"].astype(jnp.float32).T.astype(jnp.bfloat16)      # (D, 4D)
    b_fc = params["b_fc"].reshape(1, 4 * D).astype(jnp.float32)
    w_proj_t = params["w_proj"].astype(jnp.float32).T.astype(jnp.bfloat16)  # (4D, D)
    b_proj = params["b_proj"].reshape(1, D).astype(jnp.float32)

    ln1_g = params["ln1_g"].reshape(1, D).astype(jnp.float32)
    ln1_b = params["ln1_b"].reshape(1, D).astype(jnp.float32)
    ln2_g = params["ln2_g"].reshape(1, D).astype(jnp.float32)
    ln2_b = params["ln2_b"].reshape(1, D).astype(jnp.float32)

    compiler_params = pltpu.CompilerParams(
        dimension_semantics=("parallel",),
        vmem_limit_bytes=vmem_limit_bytes)

    # ---- kernel 1: attention + residual, grid over batch ------------------------------
    in_specs = [
        pl.BlockSpec((None, L, D), lambda b: (b, 0, 0)),        # x, batch dim squeezed
        _const_spec((1, D)), _const_spec((1, D)),               # ln1 gamma / beta
        _const_spec((D, 3 * D)), _const_spec((1, 3 * D)),       # in_proj (pre-T, bf16)/bias
        _const_spec((D, D)), _const_spec((1, D)),               # out_proj (pre-T, bf16)/bias
    ]
    args = [x, ln1_g, ln1_b, w_qkv_t, b_qkv, w_out_t, b_out]
    if attn_mask is not None:
        in_specs.append(_const_spec((L, L)))                    # additive attention mask
        args.append(attn_mask.astype(jnp.float32).reshape(L, L))

    y = pl.pallas_call(
        functools.partial(_attn_kernel, n_head=n_head),
        out_shape=jax.ShapeDtypeStruct((B, L, D), x.dtype),
        grid=(B,),
        in_specs=in_specs,
        out_specs=pl.BlockSpec((None, L, D), lambda b: (b, 0, 0)),
        compiler_params=compiler_params,
    )(*args)

    # ---- kernel 2: MLP + residual, grid over (B*L) row tiles ---------------------------
    R = B * L
    tm = min(row_tile, R)
    y2 = y.reshape(R, D)
    z = pl.pallas_call(
        _mlp_kernel,
        out_shape=jax.ShapeDtypeStruct((R, D), x.dtype),
        grid=(pl.cdiv(R, tm),),
        in_specs=[
            pl.BlockSpec((tm, D), lambda i: (i, 0)),            # row tile of tokens
            _const_spec((1, D)), _const_spec((1, D)),           # ln2 gamma / beta
            _const_spec((D, 4 * D)), _const_spec((1, 4 * D)),   # c_fc (pre-T, bf16)/bias
            _const_spec((4 * D, D)), _const_spec((1, D)),       # c_proj (pre-T, bf16)/bias
        ],
        out_specs=pl.BlockSpec((tm, D), lambda i: (i, 0)),
        compiler_params=compiler_params,
    )(y2, ln2_g, ln2_b, w_fc_t, b_fc, w_proj_t, b_proj)

    return z.reshape(B, L, D)


# --------------------------------------------------------------------------------------
# Pure-JAX f32 reference (same math as the PyTorch module) for verification
# --------------------------------------------------------------------------------------
def reference_block(x, params, n_head, attn_mask=None):
    B, L, D = x.shape
    hd = D // n_head

    def ln(v, g, b):
        mu = jnp.mean(v, -1, keepdims=True)
        var = jnp.mean((v - mu) ** 2, -1, keepdims=True)
        return (v - mu) / jnp.sqrt(var + 1e-5) * g + b

    x_ln = ln(x, params["ln1_g"], params["ln1_b"])
    qkv = jnp.einsum("bld,ed->ble", x_ln, params["w_qkv"]) + params["b_qkv"]
    q, k, v = jnp.split(qkv, 3, axis=-1)
    q = q.reshape(B, L, n_head, hd) / (hd ** 0.5)
    k = k.reshape(B, L, n_head, hd)
    v = v.reshape(B, L, n_head, hd)
    s = jnp.einsum("bqhd,bkhd->bhqk", q, k)
    if attn_mask is not None:
        s = s + attn_mask
    p = jax.nn.softmax(s, axis=-1)
    o = jnp.einsum("bhqk,bkhd->bqhd", p, v).reshape(B, L, D)
    attn = jnp.einsum("bld,ed->ble", o, params["w_out"]) + params["b_out"]
    y = x + attn
    y_ln = ln(y, params["ln2_g"], params["ln2_b"])
    h = jnp.einsum("bld,ed->ble", y_ln, params["w_fc"]) + params["b_fc"]
    h = h * jax.nn.sigmoid(1.702 * h)
    mlp = jnp.einsum("ble,de->bld", h, params["w_proj"]) + params["b_proj"]
    return y + mlp


if __name__ == "__main__":
    def make_params(key, d_model):
        ks = jax.random.split(key, 8)
        d4 = 4 * d_model
        return {
            "ln1_g": jnp.ones((d_model,), jnp.float32),
            "ln1_b": jnp.zeros((d_model,), jnp.float32),
            "w_qkv": 0.02 * jax.random.normal(ks[0], (3 * d_model, d_model), jnp.float32),
            "b_qkv": 0.01 * jax.random.normal(ks[1], (3 * d_model,), jnp.float32),
            "w_out": 0.02 * jax.random.normal(ks[2], (d_model, d_model), jnp.float32),
            "b_out": 0.01 * jax.random.normal(ks[3], (d_model,), jnp.float32),
            "ln2_g": jnp.ones((d_model,), jnp.float32),
            "ln2_b": jnp.zeros((d_model,), jnp.float32),
            "w_fc": 0.02 * jax.random.normal(ks[4], (d4, d_model), jnp.float32),
            "b_fc": 0.01 * jax.random.normal(ks[5], (d4,), jnp.float32),
            "w_proj": 0.02 * jax.random.normal(ks[6], (d_model, d4), jnp.float32),
            "b_proj": 0.01 * jax.random.normal(ks[7], (d_model,), jnp.float32),
        }

    def check(name, B, L, D, H, key, causal, row_tile):
        kp, kx = jax.random.split(key)
        params = make_params(kp, D)
        x = jax.random.normal(kx, (B, L, D), jnp.float32)
        mask = None
        if causal:
            mask = jnp.triu(jnp.full((L, L), float("-inf"), jnp.float32), k=1)
        out = jax.block_until_ready(
            residual_attention_block(x, params, H, attn_mask=mask, row_tile=row_tile))
        ref = jax.block_until_ready(reference_block(x, params, H, attn_mask=mask))
        assert out.shape == (B, L, D)
        max_err = float(jnp.max(jnp.abs(out - ref)))
        # bf16 matmul inputs vs f32 reference -> allow a few bf16 ulps of slack.
        assert jnp.allclose(out, ref, atol=2e-2, rtol=2e-2), \
            f"{name}: mismatch vs reference, max err {max_err}"

    root = jax.random.PRNGKey(0)
    k1, k2 = jax.random.split(root)
    # small shapes consistent with the module: batch=2, seq=8, d_model=32, n_head=4
    check("small/no-mask", B=2, L=8, D=32, H=4, key=k1, causal=False, row_tile=256)
    # causal text-tower mask, head_dim=64, two MLP row tiles (exercises real tiling)
    check("masked/hd64", B=2, L=64, D=128, H=2, key=k2, causal=True, row_tile=64)

    print("KERNEL_OK")
</pallas_src>

<mosaic_0001>
module attributes {stable_mosaic.version = 11 : i64} {
  func.func @_attn_kernel(%arg0: i32, %arg1: memref<1x8x32xf32, #tpu.memory_space<vmem>>, %arg2: memref<1x32xf32, #tpu.memory_space<vmem>>, %arg3: memref<1x32xf32, #tpu.memory_space<vmem>>, %arg4: memref<32x96xbf16, #tpu.memory_space<vmem>>, %arg5: memref<1x96xf32, #tpu.memory_space<vmem>>, %arg6: memref<32x32xbf16, #tpu.memory_space<vmem>>, %arg7: memref<1x32xf32, #tpu.memory_space<vmem>>, %arg8: memref<1x8x32xf32, #tpu.memory_space<vmem>>) attributes {dimension_semantics = [#tpu.dimension_semantics<parallel>], iteration_bounds = array<i64: 2>, scalar_prefetch = 0 : i64, scratch_operands = 0 : i64, tpu.core_type = #tpu.core_type<tc>, window_params = [{transform_indices = @transform_0, window_bounds = array<i64: 1, 8, 32>}, {pipeline_mode = #tpu.pipeline_mode<synchronous>, transform_indices = @transform_1, window_bounds = array<i64: 1, 32>}, {pipeline_mode = #tpu.pipeline_mode<synchronous>, transform_indices = @transform_2, window_bounds = array<i64: 1, 32>}, {pipeline_mode = #tpu.pipeline_mode<synchronous>, transform_indices = @transform_3, window_bounds = array<i64: 32, 96>}, {pipeline_mode = #tpu.pipeline_mode<synchronous>, transform_indices = @transform_4, window_bounds = array<i64: 1, 96>}, {pipeline_mode = #tpu.pipeline_mode<synchronous>, transform_indices = @transform_5, window_bounds = array<i64: 32, 32>}, {pipeline_mode = #tpu.pipeline_mode<synchronous>, transform_indices = @transform_6, window_bounds = array<i64: 1, 32>}, {transform_indices = @transform_7, window_bounds = array<i64: 1, 8, 32>}]} {
    %c0 = arith.constant 0 : index
    %c0_0 = arith.constant 0 : index
    %c0_1 = arith.constant 0 : index
    %0 = vector.load %arg1[%c0, %c0_0, %c0_1] : memref<1x8x32xf32, #tpu.memory_space<vmem>>, vector<1x8x32xf32>
    %1 = vector.shape_cast %0 : vector<1x8x32xf32> to vector<8x32xf32>
    %c0_2 = arith.constant 0 : index
    %c0_3 = arith.constant 0 : index
    %2 = vector.load %arg2[%c0_2, %c0_3] : memref<1x32xf32, #tpu.memory_space<vmem>>, vector<1x32xf32>
    %c0_4 = arith.constant 0 : index
    %c0_5 = arith.constant 0 : index
    %3 = vector.load %arg3[%c0_4, %c0_5] : memref<1x32xf32, #tpu.memory_space<vmem>>, vector<1x32xf32>
    %cst = arith.constant dense<0.000000e+00> : vector<8xf32>
    %4 = vector.multi_reduction <add>, %1, %cst [1] : vector<8x32xf32> to vector<8xf32>
    %5 = vector.shape_cast %4 : vector<8xf32> to vector<8x1xf32>
    %cst_6 = arith.constant 3.200000e+01 : f32
    %6 = vector.broadcast %cst_6 : f32 to vector<8x1xf32>
    %7 = arith.divf %5, %6 : vector<8x1xf32>
    %8 = vector.broadcast %7 : vector<8x1xf32> to vector<8x32xf32>
    %9 = arith.subf %1, %8 : vector<8x32xf32>
    %10 = arith.mulf %9, %9 : vector<8x32xf32>
    %cst_7 = arith.constant dense<0.000000e+00> : vector<8xf32>
    %11 = vector.multi_reduction <add>, %10, %cst_7 [1] : vector<8x32xf32> to vector<8xf32>
    %12 = vector.shape_cast %11 : vector<8xf32> to vector<8x1xf32>
    %cst_8 = arith.constant 3.200000e+01 : f32
    %13 = vector.broadcast %cst_8 : f32 to vector<8x1xf32>
    %14 = arith.divf %12, %13 : vector<8x1xf32>
    %15 = vector.broadcast %7 : vector<8x1xf32> to vector<8x32xf32>
    %16 = arith.subf %1, %15 : vector<8x32xf32>
    %cst_9 = arith.constant 9.99999974E-6 : f32
    %17 = vector.broadcast %cst_9 : f32 to vector<8x1xf32>
    %18 = arith.addf %14, %17 : vector<8x1xf32>
    %19 = math.rsqrt %18 : vector<8x1xf32>
    %20 = vector.broadcast %19 : vector<8x1xf32> to vector<8x32xf32>
    %21 = arith.mulf %16, %20 : vector<8x32xf32>
    %22 = vector.broadcast %2 : vector<1x32xf32> to vector<8x32xf32>
    %23 = arith.mulf %21, %22 : vector<8x32xf32>
    %24 = vector.broadcast %3 : vector<1x32xf32> to vector<8x32xf32>
    %25 = arith.addf %23, %24 : vector<8x32xf32>
    %26 = arith.truncf %25 : vector<8x32xf32> to vector<8x32xbf16>
    %c0_10 = arith.constant 0 : index
    %c0_11 = arith.constant 0 : index
    %27 = vector.load %arg4[%c0_10, %c0_11] : memref<32x96xbf16, #tpu.memory_space<vmem>>, vector<32x96xbf16>
    %cst_12 = arith.constant dense<0.000000e+00> : vector<8x96xf32>
    %28 = tpu.matmul %26, %27, %cst_12 {dimension_numbers = #tpu.dot_dimension_numbers<[1], [0], [0], [1], [0, 0, 1, 1], [], []>} : vector<8x32xbf16>, vector<32x96xbf16>, vector<8x96xf32> -> vector<8x96xf32>
    %c0_13 = arith.constant 0 : index
    %c0_14 = arith.constant 0 : index
    %29 = vector.load %arg5[%c0_13, %c0_14] : memref<1x96xf32, #tpu.memory_space<vmem>>, vector<1x96xf32>
    %30 = vector.broadcast %29 : vector<1x96xf32> to vector<8x96xf32>
    %31 = arith.addf %28, %30 : vector<8x96xf32>
    %32 = arith.truncf %31 : vector<8x96xf32> to vector<8x96xbf16>
    %33 = vector.shape_cast %32 : vector<8x96xbf16> to vector<8x12x8xbf16>
    %34 = tpu.transpose %33, [1, 0, 2] : vector<8x12x8xbf16> -> vector<12x8x8xbf16>
    %35 = vector.extract_strided_slice %34 {offsets = [0, 0, 0], sizes = [4, 8, 8], strides = [1, 1, 1]} : vector<12x8x8xbf16> to vector<4x8x8xbf16>
    %36 = vector.extract_strided_slice %34 {offsets = [4, 0, 0], sizes = [4, 8, 8], strides = [1, 1, 1]} : vector<12x8x8xbf16> to vector<4x8x8xbf16>
    %37 = vector.extract_strided_slice %34 {offsets = [8, 0, 0], sizes = [4, 8, 8], strides = [1, 1, 1]} : vector<12x8x8xbf16> to vector<4x8x8xbf16>
    "tpu.trace_start"() <{level = 10 : i32, message = "hqd,hkd->hqk"}> : () -> ()
    %cst_15 = arith.constant dense<0.000000e+00> : vector<4x8x8xf32>
    %38 = tpu.matmul %35, %36, %cst_15 {dimension_numbers = #tpu.dot_dimension_numbers<[2], [2], [1], [1], [0, 0, 0, 1, 1, 1], [0], [0]>} : vector<4x8x8xbf16>, vector<4x8x8xbf16>, vector<4x8x8xf32> -> vector<4x8x8xf32>
    "tpu.trace_stop"() : () -> ()
    %cst_16 = arith.constant dense<0xFF800000> : vector<4x8xf32>
    %39 = vector.multi_reduction <maximumf>, %38, %cst_16 [2] : vector<4x8x8xf32> to vector<4x8xf32>
    %40 = vector.shape_cast %39 : vector<4x8xf32> to vector<4x8x1xf32>
    %41 = vector.broadcast %40 : vector<4x8x1xf32> to vector<4x8x8xf32>
    %42 = arith.subf %38, %41 : vector<4x8x8xf32>
    %43 = math.exp %42 : vector<4x8x8xf32>
    %cst_17 = arith.constant dense<0.000000e+00> : vector<4x8xf32>
    %44 = vector.multi_reduction <add>, %43, %cst_17 [2] : vector<4x8x8xf32> to vector<4x8xf32>
    %45 = vector.shape_cast %44 : vector<4x8xf32> to vector<4x8x1xf32>
    %46 = tpu.reciprocal %45 {approx = true} : vector<4x8x1xf32> -> vector<4x8x1xf32>
    %47 = vector.broadcast %46 : vector<4x8x1xf32> to vector<4x8x8xf32>
    %48 = arith.mulf %43, %47 : vector<4x8x8xf32>
    %49 = arith.truncf %48 : vector<4x8x8xf32> to vector<4x8x8xbf16>
    "tpu.trace_start"() <{level = 10 : i32, message = "hqk,hkd->hqd"}> : () -> ()
    %cst_18 = arith.constant dense<0.000000e+00> : vector<4x8x8xf32>
    %50 = tpu.matmul %49, %37, %cst_18 {dimension_numbers = #tpu.dot_dimension_numbers<[2], [1], [1], [2], [0, 0, 0, 1, 1, 2], [0], [0]>} : vector<4x8x8xbf16>, vector<4x8x8xbf16>, vector<4x8x8xf32> -> vector<4x8x8xf32>
    "tpu.trace_stop"() : () -> ()
    %51 = arith.truncf %50 : vector<4x8x8xf32> to vector<4x8x8xbf16>
    %52 = tpu.transpose %51, [1, 0, 2] : vector<4x8x8xbf16> -> vector<8x4x8xbf16>
    %53 = vector.shape_cast %52 : vector<8x4x8xbf16> to vector<8x32xbf16>
    %c0_19 = arith.constant 0 : index
    %c0_20 = arith.constant 0 : index
    %54 = vector.load %arg6[%c0_19, %c0_20] : memref<32x32xbf16, #tpu.memory_space<vmem>>, vector<32x32xbf16>
    %cst_21 = arith.constant dense<0.000000e+00> : vector<8x32xf32>
    %55 = tpu.matmul %53, %54, %cst_21 {dimension_numbers = #tpu.dot_dimension_numbers<[1], [0], [0], [1], [0, 0, 1, 1], [], []>} : vector<8x32xbf16>, vector<32x32xbf16>, vector<8x32xf32> -> vector<8x32xf32>
    %c0_22 = arith.constant 0 : index
    %c0_23 = arith.constant 0 : index
    %56 = vector.load %arg7[%c0_22, %c0_23] : memref<1x32xf32, #tpu.memory_space<vmem>>, vector<1x32xf32>
    %57 = vector.broadcast %56 : vector<1x32xf32> to vector<8x32xf32>
    %58 = arith.addf %55, %57 : vector<8x32xf32>
    %59 = arith.addf %1, %58 : vector<8x32xf32>
    %c0_24 = arith.constant 0 : index
    %c0_25 = arith.constant 0 : index
    %c0_26 = arith.constant 0 : index
    %60 = vector.load %arg8[%c0_24, %c0_25, %c0_26] : memref<1x8x32xf32, #tpu.memory_space<vmem>>, vector<1x8x32xf32>
    %61 = vector.shape_cast %60 : vector<1x8x32xf32> to vector<8x32xf32>
    %62 = vector.shape_cast %59 : vector<8x32xf32> to vector<1x8x32xf32>
    tpu.vector_store %arg8[%c0_24, %c0_25, %c0_26], %62 {strides = array<i32>} : memref<1x8x32xf32, #tpu.memory_space<vmem>>, vector<1x8x32xf32>,
    return
  }
  func.func @transform_0(%arg0: i32) -> (i32, i32, i32) {
    %c0_i32 = arith.constant 0 : i32
    %c0_i32_0 = arith.constant 0 : i32
    %c0_i32_1 = arith.constant 0 : i32
    return %arg0, %c0_i32, %c0_i32_0 : i32, i32, i32
  }
  func.func @transform_1(%arg0: i32) -> (i32, i32) {
    %c0_i32 = arith.constant 0 : i32
    %c0_i32_0 = arith.constant 0 : i32
    %c0_i32_1 = arith.constant 0 : i32
    return %c0_i32, %c0_i32_0 : i32, i32
  }
  func.func @transform_2(%arg0: i32) -> (i32, i32) {
    %c0_i32 = arith.constant 0 : i32
    %c0_i32_0 = arith.constant 0 : i32
    %c0_i32_1 = arith.constant 0 : i32
    return %c0_i32, %c0_i32_0 : i32, i32
  }
  func.func @transform_3(%arg0: i32) -> (i32, i32) {
    %c0_i32 = arith.constant 0 : i32
    %c0_i32_0 = arith.constant 0 : i32
    %c0_i32_1 = arith.constant 0 : i32
    return %c0_i32, %c0_i32_0 : i32, i32
  }
  func.func @transform_4(%arg0: i32) -> (i32, i32) {
    %c0_i32 = arith.constant 0 : i32
    %c0_i32_0 = arith.constant 0 : i32
    %c0_i32_1 = arith.constant 0 : i32
    return %c0_i32, %c0_i32_0 : i32, i32
  }
  func.func @transform_5(%arg0: i32) -> (i32, i32) {
    %c0_i32 = arith.constant 0 : i32
    %c0_i32_0 = arith.constant 0 : i32
    %c0_i32_1 = arith.constant 0 : i32
    return %c0_i32, %c0_i32_0 : i32, i32
  }
  func.func @transform_6(%arg0: i32) -> (i32, i32) {
    %c0_i32 = arith.constant 0 : i32
    %c0_i32_0 = arith.constant 0 : i32
    %c0_i32_1 = arith.constant 0 : i32
    return %c0_i32, %c0_i32_0 : i32, i32
  }
  func.func @transform_7(%arg0: i32) -> (i32, i32, i32) {
    %c0_i32 = arith.constant 0 : i32
    %c0_i32_0 = arith.constant 0 : i32
    %c0_i32_1 = arith.constant 0 : i32
    return %arg0, %c0_i32, %c0_i32_0 : i32, i32, i32
  }
}

</mosaic_0001>

<llo_original>
// kernel: tpu_custom_call.1
$region0: #{tpu_custom_call.1}
  #allocation0 [shape = 'u32[]', space=smem, size = 0x4, offset = 0x4, fixed_abs, tag = 'smem constant byte address 0x4 - core index']
  #allocation1 [shape = 'u32[144,128]{1,0:T(1,128)}', space=vmem, size = 0x12000, scoped, tag = 'internal scratch']
  %s0 = inlined_call_operand.hbm [shape: f32[2,8,32], index: 0, kind: input, shape index: {}]
  %s1 = inlined_call_operand.vmem [shape: f32[1,32], index: 1, kind: input, shape index: {}]
  %s2 = inlined_call_operand.vmem [shape: f32[1,32], index: 2, kind: input, shape index: {}]
  %s3 = inlined_call_operand.hbm [shape: bf16[32,96], index: 3, kind: input, shape index: {}]
  %s4 = inlined_call_operand.hbm [shape: f32[1,96], index: 4, kind: input, shape index: {}]
  %s5 = inlined_call_operand.vmem [shape: bf16[32,32], index: 5, kind: input, shape index: {}]
  %s6 = inlined_call_operand.vmem [shape: f32[1,32], index: 6, kind: input, shape index: {}]
  %s7 = inlined_call_operand.hbm [shape: f32[2,8,32], index: 7, kind: output, shape index: {}]
  %s8 = sld [smem:[#allocation0]]
  $region73: #{tpu_custom_call.1} parent=0
    _
  %s10 = ssub.s32 1, %s8
  %s11 = scalar_select 0, %s10, %s8
  $region1: #{tpu_custom_call.1} parent=0
    #allocation2 [shape = 'u8[8192]{0}', space=vmem, size = 0x2000, scoped, tag = 'input window, operand 0']
    #allocation3 [shape = 's32[2]{0}', space=sflag, size = 0x8, scoped, tag = 'scoped memory for tpu_custom_call.1']
    #allocation4 [shape = 's32[2]{0}', space=sflag, size = 0x8, scoped, tag = 'scoped memory for tpu_custom_call.1']
    #allocation5 [shape = 'u8[8192]{0}', space=vmem, size = 0x2000, scoped, tag = 'input window, operand 3, single buffered']
    #allocation6 [shape = 's32[1]{0}', space=sflag, size = 0x4, scoped, tag = 'scoped memory for tpu_custom_call.1']
    #allocation7 [shape = 'u8[512]{0}', space=vmem, size = 0x400, scoped, tag = 'input window, operand 4, single buffered']
    #allocation8 [shape = 'u8[8192]{0}', space=vmem, size = 0x2000, scoped, tag = 'output window, operand 0']
    %12 = vsyncpa [#allocation3], 0
    %s13 = scalar_lea.sflag [#allocation3], 1
    %14 = vsyncpa %s13, 0
    %15 = vsyncpa [#allocation6], 0
    %16 = vsyncpa [#allocation4], 0
    %s17 = scalar_lea.sflag [#allocation4], 1
    %18 = vsyncpa %s17, 0
    loop: start=0, step=1, limit=4
    $region2: #{tpu_custom_call.1} parent=1 // loop_pre_header
      _
    $region3: #{tpu_custom_call.1} parent=1 // loop_header
      %s20 = sphi 0, %s24
      %p21 = scmp.ge.s32.totalorder %s20, 4
      %s30 = sphi 0, %s32
      %s33 = sphi 0, %s30
      %s34 = sphi 0, %s33
      %s50 = sphi 0, %s34
      %s54 = sphi 0, %s54
      %s56 = sphi 0, %s54
      %s57 = sphi 0, %s56
      %s71 = sphi 0, %s57
      %s75 = sphi 0, %s75
      %s77 = sphi 0, %s75
      %s78 = sphi 0, %s77
      %s92 = sphi 0, %s78
      %s96 = sphi 0, %s96
      %s98 = sphi 0, %s96
      %s99 = sphi 0, %s98
      %s113 = sphi 0, %s99
      %s117 = sphi 0, %s117
      %s119 = sphi 0, %s117
      %s120 = sphi 0, %s119
      %s134 = sphi 0, %s120
      %s138 = sphi 0, %s138
      %s140 = sphi 0, %s138
      %s141 = sphi 0, %s140
      %s155 = sphi 0, %s141
      %s159 = sphi 0, %s159
      %s161 = sphi 0, %s159
      %s162 = sphi 0, %s161
      %s176 = sphi 0, %s162
      %s182 = sphi 0, %s184
      %s185 = sphi 0, %s182
      %s186 = sphi 0, %s185
      %s202 = sphi 0, %s186
    $region4: #{tpu_custom_call.1} parent=1 // loop_header_branch
      %23 = sbr.rel (%p21) target = $region8
    $region5: #{tpu_custom_call.1} parent=1 // loop_body
      %s25 = ssub.s32 %s20, 1
      %s26 = ssub.s32 %s20, 2
      %s27 = sadd.s32 %s20, 1
      %s28 = ssub.s32 %s20, %s27
      %p29 = scmp.eq.s32.totalorder %s28, 0
      %s31 = sadd.s32 %s30, 1
      %s32 = scalar_select %p29, %s30, %s31
      %p35 = pneg %p29
      %p36 = scmp.eq.s32.totalorder %s20, 1
      %p37 = por %p35, %p36
      %p38 = scmp.ne.s32.totalorder %s30, %s33
      %p39 = scmp.eq.s32.totalorder %s20, 0
      %p40 = por %p38, %p39
      %p41 = scmp.ne.s32.totalorder %s30, %s33
      %p42 = scmp.eq.s32.totalorder %s25, 1
      %p43 = por %p41, %p42
      %p44 = scmp.ne.s32.totalorder %s33, %s34
      %p45 = scmp.eq.s32.totalorder %s25, 0
      %p46 = por %p44, %p45
      %p47 = scmp.ne.s32.totalorder %s33, %s34
      %p48 = scmp.eq.s32.totalorder %s26, 1
      %p49 = por %p47, %p48
      %p51 = scmp.ne.s32.totalorder %s34, %s50
      %p52 = scmp.eq.s32.totalorder %s26, 0
      %p53 = por %p51, %p52
      %s55 = sadd.s32 %s54, 1
      %p58 = scmp.eq.s32.totalorder %s20, 1
      %p59 = scmp.ne.s32.totalorder %s54, %s56
      %p60 = scmp.eq.s32.totalorder %s20, 0
      %p61 = por %p59, %p60
      %p62 = scmp.ne.s32.totalorder %s54, %s56
      %p63 = scmp.eq.s32.totalorder %s25, 1
      %p64 = por %p62, %p63
      %p65 = scmp.ne.s32.totalorder %s56, %s57
      %p66 = scmp.eq.s32.totalorder %s25, 0
      %p67 = por %p65, %p66
      %p68 = scmp.ne.s32.totalorder %s56, %s57
      %p69 = scmp.eq.s32.totalorder %s26, 1
      %p70 = por %p68, %p69
      %p72 = scmp.ne.s32.totalorder %s57, %s71
      %p73 = scmp.eq.s32.totalorder %s26, 0
      %p74 = por %p72, %p73
      %s76 = sadd.s32 %s75, 1
      %p79 = scmp.eq.s32.totalorder %s20, 1
      %p80 = scmp.ne.s32.totalorder %s75, %s77
      %p81 = scmp.eq.s32.totalorder %s20, 0
      %p82 = por %p80, %p81
      %p83 = scmp.ne.s32.totalorder %s75, %s77
      %p84 = scmp.eq.s32.totalorder %s25, 1
      %p85 = por %p83, %p84
      %p86 = scmp.ne.s32.totalorder %s77, %s78
      %p87 = scmp.eq.s32.totalorder %s25, 0
      %p88 = por %p86, %p87
      %p89 = scmp.ne.s32.totalorder %s77, %s78
      %p90 = scmp.eq.s32.totalorder %s26, 1
      %p91 = por %p89, %p90
      %p93 = scmp.ne.s32.totalorder %s78, %s92
      %p94 = scmp.eq.s32.totalorder %s26, 0
      %p95 = por %p93, %p94
      %s97 = sadd.s32 %s96, 1
      %p100 = scmp.eq.s32.totalorder %s20, 1
      %p101 = scmp.ne.s32.totalorder %s96, %s98
      %p102 = scmp.eq.s32.totalorder %s20, 0
      %p103 = por %p101, %p102
      %p104 = scmp.ne.s32.totalorder %s96, %s98
      %p105 = scmp.eq.s32.totalorder %s25, 1
      %p106 = por %p104, %p105
      %p107 = scmp.ne.s32.totalorder %s98, %s99
      %p108 = scmp.eq.s32.totalorder %s25, 0
      %p109 = por %p107, %p108
      %p110 = scmp.ne.s32.totalorder %s98, %s99
      %p111 = scmp.eq.s32.totalorder %s26, 1
      %p112 = por %p110, %p111
      %p114 = scmp.ne.s32.totalorder %s99, %s113
      %p115 = scmp.eq.s32.totalorder %s26, 0
      %p116 = por %p114, %p115
      %s118 = sadd.s32 %s117, 1
      %p121 = scmp.eq.s32.totalorder %s20, 1
      %p122 = scmp.ne.s32.totalorder %s117, %s119
      %p123 = scmp.eq.s32.totalorder %s20, 0
      %p124 = por %p122, %p123
      %p125 = scmp.ne.s32.totalorder %s117, %s119
      %p126 = scmp.eq.s32.totalorder %s25, 1
      %p127 = por %p125, %p126
      %p128 = scmp.ne.s32.totalorder %s119, %s120
      %p129 = scmp.eq.s32.totalorder %s25, 0
      %p130 = por %p128, %p129
      %p131 = scmp.ne.s32.totalorder %s119, %s120
      %p132 = scmp.eq.s32.totalorder %s26, 1
      %p133 = por %p131, %p132
      %p135 = scmp.ne.s32.totalorder %s120, %s134
      %p136 = scmp.eq.s32.totalorder %s26, 0
      %p137 = por %p135, %p136
      %s139 = sadd.s32 %s138, 1
      %p142 = scmp.eq.s32.totalorder %s20, 1
      %p143 = scmp.ne.s32.totalorder %s138, %s140
      %p144 = scmp.eq.s32.totalorder %s20, 0
      %p145 = por %p143, %p144
      %p146 = scmp.ne.s32.totalorder %s138, %s140
      %p147 = scmp.eq.s32.totalorder %s25, 1
      %p148 = por %p146, %p147
      %p149 = scmp.ne.s32.totalorder %s140, %s141
      %p150 = scmp.eq.s32.totalorder %s25, 0
      %p151 = por %p149, %p150
      %p152 = scmp.ne.s32.totalorder %s140, %s141
      %p153 = scmp.eq.s32.totalorder %s26, 1
      %p154 = por %p152, %p153
      %p156 = scmp.ne.s32.totalorder %s141, %s155
      %p157 = scmp.eq.s32.totalorder %s26, 0
      %p158 = por %p156, %p157
      %s160 = sadd.s32 %s159, 1
      %p163 = scmp.eq.s32.totalorder %s20, 1
      %p164 = scmp.ne.s32.totalorder %s159, %s161
      %p165 = scmp.eq.s32.totalorder %s20, 0
      %p166 = por %p164, %p165
      %p167 = scmp.ne.s32.totalorder %s159, %s161
      %p168 = scmp.eq.s32.totalorder %s25, 1
      %p169 = por %p167, %p168
      %p170 = scmp.ne.s32.totalorder %s161, %s162
      %p171 = scmp.eq.s32.totalorder %s25, 0
      %p172 = por %p170, %p171
      %p173 = scmp.ne.s32.totalorder %s161, %s162
      %p174 = scmp.eq.s32.totalorder %s26, 1
      %p175 = por %p173, %p174
      %p177 = scmp.ne.s32.totalorder %s162, %s176
      %p178 = scmp.eq.s32.totalorder %s26, 0
      %p179 = por %p177, %p178
      %s180 = ssub.s32 %s20, %s27
      %p181 = scmp.eq.s32.totalorder %s180, 0
      %s183 = sadd.s32 %s182, 1
      %s184 = scalar_select %p181, %s182, %s183
      %p187 = pneg %p181
      %p188 = scmp.eq.s32.totalorder %s20, 1
      %p189 = por %p187, %p188
      %p190 = scmp.ne.s32.totalorder %s182, %s185
      %p191 = scmp.eq.s32.totalorder %s20, 0
      %p192 = por %p190, %p191
      %p193 = scmp.ne.s32.totalorder %s182, %s185
      %p194 = scmp.eq.s32.totalorder %s25, 1
      %p195 = por %p193, %p194
      %p196 = scmp.ne.s32.totalorder %s185, %s186
      %p197 = scmp.eq.s32.totalorder %s25, 0
      %p198 = por %p196, %p197
      %p199 = scmp.ne.s32.totalorder %s185, %s186
      %p200 = scmp.eq.s32.totalorder %s26, 1
      %p201 = por %p199, %p200
      %p203 = scmp.ne.s32.totalorder %s186, %s202
      %p204 = scmp.eq.s32.totalorder %s26, 0
      %p205 = por %p203, %p204
      %p206 = scmp.le.s32.totalorder 1, %s20
      %p207 = scmp.lt.s32.totalorder %s20, 3
      %p208 = pnand %p206, %p207
      %p209 = pneg %p208
      // Predicated region
      $region9: #{tpu_custom_call.1} parent=5 // pred_check
        _
      $region10: #{tpu_custom_call.1} parent=5 // pred_check_branch
        %211 = sbr.rel (%p208) target = $region12
      $region11: #{tpu_custom_call.1} parent=5 // pred_region
        %s212 = ssub.s32 %s20, 1
        // Predicated region
        $region13: #{tpu_custom_call.1} parent=11 // pred_check
          %p213 = pneg %p67
        $region14: #{tpu_custom_call.1} parent=11 // pred_check_branch
          %215 = sbr.rel (%p213) target = $region16
        $region15: #{tpu_custom_call.1} parent=11 // pred_region
          _
        $region16: #{tpu_custom_call.1} parent=11 // pred_fallthru
          _
        // Predicated region
        $region17: #{tpu_custom_call.1} parent=11 // pred_check
          %p216 = pneg %p88
        $region18: #{tpu_custom_call.1} parent=11 // pred_check_branch
          %218 = sbr.rel (%p216) target = $region20
        $region19: #{tpu_custom_call.1} parent=11 // pred_region
          _
        $region20: #{tpu_custom_call.1} parent=11 // pred_fallthru
          _
        // Predicated region
        $region21: #{tpu_custom_call.1} parent=11 // pred_check
          %p219 = pneg %p109
        $region22: #{tpu_custom_call.1} parent=11 // pred_check_branch
          %221 = sbr.rel (%p219) target = $region24
        $region23: #{tpu_custom_call.1} parent=11 // pred_region
          %s223 = ssub.s32 256, 256
          %224 = vsyncadd [#allocation6], %s223
          %s225 = sshll.u32 [#allocation5], 4
          %s226 = int_to_ptr.vmem [resolvable:$true] %s225
          %231 = dma.hbm_to_vmem [thread:$0]  %s3, 256, %s226, [#allocation6], 64, 64, 4
        $region24: #{tpu_custom_call.1} parent=11 // pred_fallthru
          _
        // Predicated region
        $region25: #{tpu_custom_call.1} parent=11 // pred_check
          %p232 = pneg %p130
        $region26: #{tpu_custom_call.1} parent=11 // pred_check_branch
          %234 = sbr.rel (%p232) target = $region28
        $region27: #{tpu_custom_call.1} parent=11 // pred_region
          %s236 = ssub.s32 16, 16
          %237 = vsyncadd [#allocation6], %s236
          %s239 = sshll.u32 [#allocation7], 4
          %s240 = int_to_ptr.vmem [resolvable:$true] %s239
          %242 = dma.hbm_to_vmem [thread:$0]  %s4, 16, %s240, [#allocation6]
        $region28: #{tpu_custom_call.1} parent=11 // pred_fallthru
          _
        // Predicated region
        $region29: #{tpu_custom_call.1} parent=11 // pred_check
          %p243 = pneg %p151
        $region30: #{tpu_custom_call.1} parent=11 // pred_check_branch
          %245 = sbr.rel (%p243) target = $region32
        $region31: #{tpu_custom_call.1} parent=11 // pred_region
          _
        $region32: #{tpu_custom_call.1} parent=11 // pred_fallthru
          _
        // Predicated region
        $region33: #{tpu_custom_call.1} parent=11 // pred_check
          %p246 = pneg %p172
        $region34: #{tpu_custom_call.1} parent=11 // pred_check_branch
          %248 = sbr.rel (%p246) target = $region36
        $region35: #{tpu_custom_call.1} parent=11 // pred_region
          _
        $region36: #{tpu_custom_call.1} parent=11 // pred_fallthru
          _
      $region12: #{tpu_custom_call.1} parent=5 // pred_fallthru
        _
      %p249 = scmp.lt.s32.totalorder %s20, 2
      // Predicated region
      $region37: #{tpu_custom_call.1} parent=5 // pred_check
        %p250 = pneg %p249
      $region38: #{tpu_custom_call.1} parent=5 // pred_check_branch
        %252 = sbr.rel (%p250) target = $region40
      $region39: #{tpu_custom_call.1} parent=5 // pred_region
        // Predicated region
        $region41: #{tpu_custom_call.1} parent=39 // pred_check
          %p253 = pneg %p40
        $region42: #{tpu_custom_call.1} parent=39 // pred_check_branch
          %255 = sbr.rel (%p253) target = $region44
        $region43: #{tpu_custom_call.1} parent=39 // pred_region
          %s256 = sand.u32 %s30, 1
          %s257 = scalar_lea.sflag [#allocation3], %s256
          %s258 = sand.u32 %s30, 1
          %s259 = smul.addr %s258, 8
          %s260 = scalar_lea.vmem [#allocation2], %s259
          %s262 = ssub.s32 128, 128
          %263 = vsyncadd %s257, %s262
          %s264 = smul.addr %s20, 128
          %s265 = scalar_lea.hbm %s0, %s264
          %s267 = sshll.u32 %s260, 4
          %s268 = int_to_ptr.vmem [resolvable:$true] %s267
          %270 = dma.hbm_to_vmem [thread:$0]  %s265, 128, %s268, %s257
        $region44: #{tpu_custom_call.1} parent=39 // pred_fallthru
          _
      $region40: #{tpu_custom_call.1} parent=5 // pred_fallthru
        _
      %p271 = scmp.le.s32.totalorder 1, %s20
      %p272 = scmp.lt.s32.totalorder %s20, 3
      %p273 = pnand %p271, %p272
      %p274 = pneg %p273
      // Predicated region
      $region45: #{tpu_custom_call.1} parent=5 // pred_check
        _
      $region46: #{tpu_custom_call.1} parent=5 // pred_check_branch
        %276 = sbr.rel (%p273) target = $region48
      $region47: #{tpu_custom_call.1} parent=5 // pred_region
        %s277 = ssub.s32 %s20, 1
        %s278 = sand.u32 %s33, 1
        %s279 = scalar_lea.sflag [#allocation3], %s278
        %s280 = sand.u32 %s33, 1
        %s281 = smul.addr %s280, 8
        %s282 = scalar_lea.vmem [#allocation2], %s281
        // Predicated region
        $region49: #{tpu_custom_call.1} parent=47 // pred_check
          %p283 = pneg %p46
        $region50: #{tpu_custom_call.1} parent=47 // pred_check_branch
          %285 = sbr.rel (%p283) target = $region52
        $region51: #{tpu_custom_call.1} parent=47 // pred_region
          %286 = dma.done %s279, 128
        $region52: #{tpu_custom_call.1} parent=47 // pred_fallthru
          _
        // Predicated region
        $region53: #{tpu_custom_call.1} parent=47 // pred_check
          %p287 = pneg %p109
        $region54: #{tpu_custom_call.1} parent=47 // pred_check_branch
          %289 = sbr.rel (%p287) target = $region56
        $region55: #{tpu_custom_call.1} parent=47 // pred_region
          %290 = dma.done [#allocation6], 256
        $region56: #{tpu_custom_call.1} parent=47 // pred_fallthru
          _
        // Predicated region
        $region57: #{tpu_custom_call.1} parent=47 // pred_check
          %p291 = pneg %p130
        $region58: #{tpu_custom_call.1} parent=47 // pred_check_branch
          %293 = sbr.rel (%p291) target = $region60
        $region59: #{tpu_custom_call.1} parent=47 // pred_region
          %294 = dma.done [#allocation6], 16
        $region60: #{tpu_custom_call.1} parent=47 // pred_fallthru
          _
        %s295 = sand.u32 %s33, 1
        %s296 = scalar_lea.sflag [#allocation3], %s295
        %s297 = sand.u32 %s33, 1
        %s298 = smul.addr %s297, 8
        %s299 = scalar_lea.vmem [#allocation2], %s298
        %p300 = pneg %p46
        %p301 = pneg %p43
        %p302 = pneg %p67
        %p303 = pneg %p64
        %p304 = pneg %p88
        %p305 = pneg %p85
        %p306 = pneg %p109
        %p307 = pneg %p106
        %p308 = pneg %p130
        %p309 = pneg %p127
        %p310 = pneg %p151
        %p311 = pneg %p148
        %p312 = pneg %p172
        %p313 = pneg %p169
        %p314 = pneg %p198
        %p315 = pneg %p195
        %s316 = sand.u32 %s185, 1
        %s317 = scalar_lea.sflag [#allocation4], %s316
        %s318 = sand.u32 %s185, 1
        %s319 = smul.addr %s318, 8
        %s320 = scalar_lea.vmem [#allocation8], %s319
        %v322 = vld [vmem:[%s282] sm:$0xff]
        %v323 = vld [vmem:[%s1] sm:$0x1]
        %v324 = vld [vmem:[%s2] sm:$0x1]
        %vm325 = vcmask 261120
        %v326 = vsel %vm325, %v322, 0.0
        %327 = vadd.xlane.f32.xlu0 %v326
        %v328 = vpop.xlane.xlu0 %327
        %v329 = vrcp.pop 32.0
        %v330 = vmul.f32 %v328, %v329
        %v331 = vsub.f32 %v322, %v330
        %v332 = vmul.f32 %v331, %v331
        %v333 = vsel %vm325, %v332, 0.0
        %334 = vadd.xlane.f32.xlu0 %v333
        %v335 = vpop.xlane.xlu0 %334
        %v336 = vmul.f32 %v335, %v329
        %v337 = vadd.f32 %v336, 1e-05
        %v338 = vrsqrt.pop %v337
        %v339 = vmul.f32 %v331, %v338
        %v341 = vlaneseq
        %v342 = vshrl.u32 %v341, 7
        %v343 = vsub.s32 0, %v342
        %v344 = vrot.slane %v323, %v343
        %v346 = vmul.f32 %v339, %v344
        %v348 = vlaneseq
        %v349 = vshrl.u32 %v348, 7
        %v350 = vsub.s32 0, %v349
        %v351 = vrot.slane %v324, %v350
        %v353 = vadd.f32 %v346, %v351
        %v354 = vpack.c.bf16 %v353, %v353
        %v355 = vld [vmem:[#allocation5] sm:$0xf]
        %v356 = vld [vmem:[#allocation5 + $0x4] sm:$0xf]
        %v357 = vld [vmem:[#allocation5 + $0x8] sm:$0xf]
        %v358 = vld [vmem:[#allocation5 + $0xc] sm:$0xf]
        %v359 = vld [vmem:[#allocation7] sm:$0x1]
        %v361 = vlaneseq
        %v362 = vshrl.u32 %v361, 7
        %v363 = vsub.s32 0, %v362
        %v364 = vrot.slane %v359, %v363
        %v370 = vunpack.c.l.b16 %v355
        %v371 = vunpack.c.l.b16 %v356
        %v372 = vunpack.c.l.b16 %v357
        %v373 = vunpack.c.l.b16 %v358
        %v374 = vpack.c.b16 %v371, %v370
        %v375 = vpack.c.b16 %v373, %v372
        %v379 = vsel %vm325, %v354, 0
        %381 = vmatprep.subr.bf16.mxu0 0
        %382 = vmatpush1.bf16.msra.mxu0 %v374
        %383 = vmatprep.subr.bf16.mxu0 0
        %384 = vmatpush1.bf16.msra.mxu0 %v375
        %385 = vmatprep.subr.bf16.mxu0 0
        %386 = vmatpush1.bf16.msra.mxu0 0
        %387 = vmatprep.subr.bf16.mxu0 0
        %388 = vmatpush1.bf16.msra.mxu0 0
        %389 = vmatprep.subr.bf16.mxu0 0
        %390 = vmatpush1.bf16.msra.mxu0 0
        %391 = vmatprep.subr.bf16.mxu0 0
        %392 = vmatpush1.bf16.msra.mxu0 0
        %393 = vmatprep.subr.bf16.mxu0 0
        %394 = vmatpush1.bf16.msra.mxu0 0
        %395 = vmatprep.subr.bf16.mxu0 0
        %396 = vmatpush1.bf16.msra.mxu0 0
        %397 = vmatprep.subr.bf16.mxu0 0
        %398 = vmatpush1.bf16.msra.mxu0 0
        %399 = vmatprep.subr.bf16.mxu0 0
        %400 = vmatpush1.bf16.msra.mxu0 0
        %401 = vmatprep.subr.bf16.mxu0 0
        %402 = vmatpush1.bf16.msra.mxu0 0
        %403 = vmatprep.subr.bf16.mxu0 0
        %404 = vmatpush1.bf16.msra.mxu0 0
        %405 = vmatprep.subr.bf16.mxu0 0
        %406 = vmatpush1.bf16.msra.mxu0 0
        %407 = vmatprep.subr.bf16.mxu0 0
        %408 = vmatpush1.bf16.msra.mxu0 0
        %409 = vmatprep.subr.bf16.mxu0 0
        %410 = vmatpush1.bf16.msra.mxu0 0
        %411 = vmatprep.subr.bf16.mxu0 0
        %412 = vmatpush1.bf16.msra.mxu0 0
        %413 = vmatprep.mubr.bf16.mxu0 0
        %414 = vmatmul.mubr.bf16.gmra.mrb[0].mxu0 %v379
        %v415 = vpop.f32.mrb[0].mxu0
        %v416 = vadd.f32 %v364, %v415
        %v417 = vpop.f32.mrb[0].mxu0
        %v418 = vpop.f32.mrb[0].mxu0
        %v419 = vpop.f32.mrb[0].mxu0
        %420 = vdwg.mxu0
        %v421 = vpack.c.bf16 %v416, %v416
        %423 = vrot.lane.b32.xlu0 %v421, 120
        %v424 = vpop.permute.xlu0 %423
        %426 = vrot.lane.b32.xlu0 %v421, 112
        %v427 = vpop.permute.xlu0 %426
        %429 = vrot.lane.b32.xlu0 %v421, 104
        %v430 = vpop.permute.xlu0 %429
        %432 = vrot.lane.b32.xlu0 %v421, 96
        %v433 = vpop.permute.xlu0 %432
        %435 = vrot.lane.b32.xlu0 %v421, 88
        %v436 = vpop.permute.xlu0 %435
        %438 = vrot.lane.b32.xlu0 %v421, 80
        %v439 = vpop.permute.xlu0 %438
        %441 = vrot.lane.b32.xlu0 %v421, 72
        %v442 = vpop.permute.xlu0 %441
        %444 = vrot.lane.b32.xlu0 %v421, 64
        %v445 = vpop.permute.xlu0 %444
        %446 = vrot.lane.b32.xlu0 %v421, 56
        %v447 = vpop.permute.xlu0 %446
        %448 = vrot.lane.b32.xlu0 %v421, 48
        %v449 = vpop.permute.xlu0 %448
        %450 = vrot.lane.b32.xlu0 %v421, 40
        %v451 = vpop.permute.xlu0 %450
        %v452 = vcombine.low %v421, %v433
        %v454 = vunpack.c.l.s4 1983009808
        %v455 = vunpack.c.0.s8 %v454
        %v456 = vlaneseq
        %v457 = vshrl.u32 %v456, 7
        %v458 = vsub.s32 %v455, %v457
        %v459 = vrot.slane %v452, %v458
        %v460 = vcombine.low %v427, %v439
        %v462 = vunpack.c.l.s4 1983009808
        %v463 = vunpack.c.0.s8 %v462
        %v464 = vlaneseq
        %v465 = vshrl.u32 %v464, 7
        %v466 = vsub.s32 %v463, %v465
        %v467 = vrot.slane %v460, %v466
        %v470 = vunpack.c.l.s4 1983009808
        %v471 = vunpack.c.0.s8 %v470
        %v472 = vlaneseq
        %v473 = vshrl.u32 %v472, 7
        %v474 = vsub.s32 %v471, %v473
        %v475 = vrot.slane %v445, %v474
        %v478 = vunpack.c.l.s4 1983009808
        %v479 = vunpack.c.0.s8 %v478
        %v480 = vlaneseq
        %v481 = vshrl.u32 %v480, 7
        %v482 = vsub.s32 %v479, %v481
        %v483 = vrot.slane %v449, %v482
        %v484 = vcombine.low %v459, %v467
        %v485 = vcombine.high %v459, %v467
        %v487 = vunpack.c.l.s4 1934713408
        %v488 = vunpack.c.0.s8 %v487
        %v489 = vlaneseq
        %v490 = vshrl.u32 %v489, 7
        %v491 = vsub.s32 %v488, %v490
        %v492 = vrot.slane %v484, %v491
        %v494 = vunpack.c.l.s4 1934713408
        %v495 = vunpack.c.0.s8 %v494
        %v496 = vlaneseq
        %v497 = vshrl.u32 %v496, 7
        %v498 = vsub.s32 %v495, %v497
        %v499 = vrot.slane %v485, %v498
        %v500 = vcombine.low %v475, %v483
        %v501 = vcombine.high %v475, %v483
        %v503 = vunpack.c.l.s4 1934713408
        %v504 = vunpack.c.0.s8 %v503
        %v505 = vlaneseq
        %v506 = vshrl.u32 %v505, 7
        %v507 = vsub.s32 %v504, %v506
        %v508 = vrot.slane %v500, %v507
        %v510 = vunpack.c.l.s4 1934713408
        %v511 = vunpack.c.0.s8 %v510
        %v512 = vlaneseq
        %v513 = vshrl.u32 %v512, 7
        %v514 = vsub.s32 %v511, %v513
        %v515 = vrot.slane %v501, %v514
        %v516 = vcombine.low %v492, %v508
        %v517 = vcombine.high %v492, %v508
        %v518 = vcombine.low %v499, %v515
        %v519 = vcombine.high %v499, %v515
        %v520 = vcombine.low %v424, %v436
        %v522 = vunpack.c.l.s4 1983009808
        %v523 = vunpack.c.0.s8 %v522
        %v524 = vlaneseq
        %v525 = vshrl.u32 %v524, 7
        %v526 = vsub.s32 %v523, %v525
        %v527 = vrot.slane %v520, %v526
        %v528 = vcombine.low %v430, %v442
        %v530 = vunpack.c.l.s4 1983009808
        %v531 = vunpack.c.0.s8 %v530
        %v532 = vlaneseq
        %v533 = vshrl.u32 %v532, 7
        %v534 = vsub.s32 %v531, %v533
        %v535 = vrot.slane %v528, %v534
        %v538 = vunpack.c.l.s4 1983009808
        %v539 = vunpack.c.0.s8 %v538
        %v540 = vlaneseq
        %v541 = vshrl.u32 %v540, 7
        %v542 = vsub.s32 %v539, %v541
        %v543 = vrot.slane %v447, %v542
        %v546 = vunpack.c.l.s4 1983009808
        %v547 = vunpack.c.0.s8 %v546
        %v548 = vlaneseq
        %v549 = vshrl.u32 %v548, 7
        %v550 = vsub.s32 %v547, %v549
        %v551 = vrot.slane %v451, %v550
        %v552 = vcombine.low %v527, %v535
        %v553 = vcombine.high %v527, %v535
        %v555 = vunpack.c.l.s4 1934713408
        %v556 = vunpack.c.0.s8 %v555
        %v557 = vlaneseq
        %v558 = vshrl.u32 %v557, 7
        %v559 = vsub.s32 %v556, %v558
        %v560 = vrot.slane %v552, %v559
        %v562 = vunpack.c.l.s4 1934713408
        %v563 = vunpack.c.0.s8 %v562
        %v564 = vlaneseq
        %v565 = vshrl.u32 %v564, 7
        %v566 = vsub.s32 %v563, %v565
        %v567 = vrot.slane %v553, %v566
        %v568 = vcombine.low %v543, %v551
        %v569 = vcombine.high %v543, %v551
        %v571 = vunpack.c.l.s4 1934713408
        %v572 = vunpack.c.0.s8 %v571
        %v573 = vlaneseq
        %v574 = vshrl.u32 %v573, 7
        %v575 = vsub.s32 %v572, %v574
        %v576 = vrot.slane %v568, %v575
        %v578 = vunpack.c.l.s4 1934713408
        %v579 = vunpack.c.0.s8 %v578
        %v580 = vlaneseq
        %v581 = vshrl.u32 %v580, 7
        %v582 = vsub.s32 %v579, %v581
        %v583 = vrot.slane %v569, %v582
        %v584 = vcombine.low %v560, %v576
        %v585 = vcombine.high %v560, %v576
        %v586 = vcombine.low %v567, %v583
        %v587 = vcombine.high %v567, %v583
        %v590 = vpack.i.b16 %v584, %v516
        %v592 = vshrl.u32 %v516, 16
        %v593 = vshrl.u32 %v584, 16
        %v594 = vpack.i.b16 %v593, %v592
        %v598 = vpack.i.b16 %v585, %v517
        %v600 = vshrl.u32 %v517, 16
        %v601 = vshrl.u32 %v585, 16
        %v602 = vpack.i.b16 %v601, %v600
        %v606 = vpack.i.b16 %v586, %v518
        %v608 = vshrl.u32 %v518, 16
        %v609 = vshrl.u32 %v586, 16
        %v610 = vpack.i.b16 %v609, %v608
        %v614 = vpack.i.b16 %v587, %v519
        %v616 = vshrl.u32 %v519, 16
        %v617 = vshrl.u32 %v587, 16
        %v618 = vpack.i.b16 %v617, %v616
        %v620 = vcombine.low %v590, %v606
        %v621 = vcombine.high %v590, %v606
        %v623 = vunpack.c.l.s4 1983009808
        %v624 = vunpack.c.0.s8 %v623
        %v625 = vlaneseq
        %v626 = vshrl.u32 %v625, 7
        %v627 = vsub.s32 %v624, %v626
        %v628 = vrot.slane %v620, %v627
        %v630 = vunpack.c.l.s4 1983009808
        %v631 = vunpack.c.0.s8 %v630
        %v632 = vlaneseq
        %v633 = vshrl.u32 %v632, 7
        %v634 = vsub.s32 %v631, %v633
        %v635 = vrot.slane %v621, %v634
        %v636 = vcombine.low %v598, %v614
        %v637 = vcombine.high %v598, %v614
        %v639 = vunpack.c.l.s4 1983009808
        %v640 = vunpack.c.0.s8 %v639
        %v641 = vlaneseq
        %v642 = vshrl.u32 %v641, 7
        %v643 = vsub.s32 %v640, %v642
        %v644 = vrot.slane %v636, %v643
        %v646 = vunpack.c.l.s4 1983009808
        %v647 = vunpack.c.0.s8 %v646
        %v648 = vlaneseq
        %v649 = vshrl.u32 %v648, 7
        %v650 = vsub.s32 %v647, %v649
        %v651 = vrot.slane %v637, %v650
        %v652 = vcombine.low %v628, %v644
        %v653 = vcombine.high %v628, %v644
        %v655 = vunpack.c.l.s4 1934713408
        %v656 = vunpack.c.0.s8 %v655
        %v657 = vlaneseq
        %v658 = vshrl.u32 %v657, 7
        %v659 = vsub.s32 %v656, %v658
        %v660 = vrot.slane %v652, %v659
        %v662 = vunpack.c.l.s4 1934713408
        %v663 = vunpack.c.0.s8 %v662
        %v664 = vlaneseq
        %v665 = vshrl.u32 %v664, 7
        %v666 = vsub.s32 %v663, %v665
        %v667 = vrot.slane %v653, %v666
        %v668 = vcombine.low %v635, %v651
        %v670 = vunpack.c.l.s4 1934713408
        %v671 = vunpack.c.0.s8 %v670
        %v672 = vlaneseq
        %v673 = vshrl.u32 %v672, 7
        %v674 = vsub.s32 %v671, %v673
        %v675 = vrot.slane %v668, %v674
        %v676 = vcombine.high %v660, 0
        %v677 = vcombine.high %v667, 0
        %v678 = vcombine.high %v675, 0
        %v679 = vcombine.low %v594, %v610
        %v680 = vcombine.high %v594, %v610
        %v682 = vunpack.c.l.s4 1983009808
        %v683 = vunpack.c.0.s8 %v682
        %v684 = vlaneseq
        %v685 = vshrl.u32 %v684, 7
        %v686 = vsub.s32 %v683, %v685
        %v687 = vrot.slane %v679, %v686
        %v689 = vunpack.c.l.s4 1983009808
        %v690 = vunpack.c.0.s8 %v689
        %v691 = vlaneseq
        %v692 = vshrl.u32 %v691, 7
        %v693 = vsub.s32 %v690, %v692
        %v694 = vrot.slane %v680, %v693
        %v695 = vcombine.low %v602, %v618
        %v696 = vcombine.high %v602, %v618
        %v698 = vunpack.c.l.s4 1983009808
        %v699 = vunpack.c.0.s8 %v698
        %v700 = vlaneseq
        %v701 = vshrl.u32 %v700, 7
        %v702 = vsub.s32 %v699, %v701
        %v703 = vrot.slane %v695, %v702
        %v705 = vunpack.c.l.s4 1983009808
        %v706 = vunpack.c.0.s8 %v705
        %v707 = vlaneseq
        %v708 = vshrl.u32 %v707, 7
        %v709 = vsub.s32 %v706, %v708
        %v710 = vrot.slane %v696, %v709
        %v711 = vcombine.low %v687, %v703
        %v712 = vcombine.high %v687, %v703
        %v714 = vunpack.c.l.s4 1934713408
        %v715 = vunpack.c.0.s8 %v714
        %v716 = vlaneseq
        %v717 = vshrl.u32 %v716, 7
        %v718 = vsub.s32 %v715, %v717
        %v719 = vrot.slane %v711, %v718
        %v721 = vunpack.c.l.s4 1934713408
        %v722 = vunpack.c.0.s8 %v721
        %v723 = vlaneseq
        %v724 = vshrl.u32 %v723, 7
        %v725 = vsub.s32 %v722, %v724
        %v726 = vrot.slane %v712, %v725
        %v727 = vcombine.low %v694, %v710
        %v729 = vunpack.c.l.s4 1934713408
        %v730 = vunpack.c.0.s8 %v729
        %v731 = vlaneseq
        %v732 = vshrl.u32 %v731, 7
        %v733 = vsub.s32 %v730, %v732
        %v734 = vrot.slane %v727, %v733
        %v735 = vcombine.high %v719, 0
        %v736 = vcombine.high %v726, 0
        %v737 = vcombine.high %v734, 0
        %v740 = vpack.i.b16 %v719, %v660
        %v741 = vshrl.u32 %v660, 16
        %v742 = vshrl.u32 %v719, 16
        %v743 = vpack.i.b16 %v742, %v741
        %v746 = vpack.i.b16 %v735, %v676
        %v747 = vshrl.u32 %v676, 16
        %v748 = vshrl.u32 %v735, 16
        %v749 = vpack.i.b16 %v748, %v747
        %v752 = vpack.i.b16 %v726, %v667
        %v753 = vshrl.u32 %v667, 16
        %v754 = vshrl.u32 %v726, 16
        %v755 = vpack.i.b16 %v754, %v753
        %v758 = vpack.i.b16 %v736, %v677
        %v759 = vshrl.u32 %v677, 16
        %v760 = vshrl.u32 %v736, 16
        %v761 = vpack.i.b16 %v760, %v759
        %v764 = vpack.i.b16 %v734, %v675
        %v765 = vshrl.u32 %v675, 16
        %v766 = vshrl.u32 %v734, 16
        %v767 = vpack.i.b16 %v766, %v765
        %v770 = vpack.i.b16 %v737, %v678
        %v771 = vshrl.u32 %v678, 16
        %v772 = vshrl.u32 %v737, 16
        %v773 = vpack.i.b16 %v772, %v771
        %vm774 = vcmask 64512
        %v776 = vsel %vm774, %v740, 0
        %v779 = vsel %vm774, %v752, 0
        %781 = vmatprep.subr.bf16.mxu0 0
        %782 = vmatpush1.bf16.xpose.msra.mxu0 %v779
        %783 = vmatprep.subr.bf16.mxu0 0
        %784 = vmatpush1.bf16.xpose.msra.mxu0 0
        %785 = vmatprep.subr.bf16.mxu0 0
        %786 = vmatpush1.bf16.xpose.msra.mxu0 0
        %787 = vmatprep.subr.bf16.mxu0 0
        %788 = vmatpush1.bf16.xpose.msra.mxu0 0
        %789 = vmatprep.subr.bf16.mxu0 0
        %790 = vmatpush1.bf16.xpose.msra.mxu0 0
        %791 = vmatprep.subr.bf16.mxu0 0
        %792 = vmatpush1.bf16.xpose.msra.mxu0 0
        %793 = vmatprep.subr.bf16.mxu0 0
        %794 = vmatpush1.bf16.xpose.msra.mxu0 0
        %795 = vmatprep.subr.bf16.mxu0 0
        %796 = vmatpush1.bf16.xpose.msra.mxu0 0
        %797 = vmatprep.subr.bf16.mxu0 0
        %798 = vmatpush1.bf16.xpose.msra.mxu0 0
        %799 = vmatprep.subr.bf16.mxu0 0
        %800 = vmatpush1.bf16.xpose.msra.mxu0 0
        %801 = vmatprep.subr.bf16.mxu0 0
        %802 = vmatpush1.bf16.xpose.msra.mxu0 0
        %803 = vmatprep.subr.bf16.mxu0 0
        %804 = vmatpush1.bf16.xpose.msra.mxu0 0
        %805 = vmatprep.subr.bf16.mxu0 0
        %806 = vmatpush1.bf16.xpose.msra.mxu0 0
        %807 = vmatprep.subr.bf16.mxu0 0
        %808 = vmatpush1.bf16.xpose.msra.mxu0 0
        %809 = vmatprep.subr.bf16.mxu0 0
        %810 = vmatpush1.bf16.xpose.msra.mxu0 0
        %811 = vmatprep.subr.bf16.mxu0 0
        %812 = vmatpush1.bf16.xpose.msra.mxu0 0
        %813 = vmatprep.mubr.bf16.mxu0 0
        %814 = vmatmul.mubr.bf16.gmra.mrb[0].mxu0 %v776
        %v815 = vpop.f32.mrb[0].mxu0
        %v816 = vadd.f32 0.0, %v815
        %v817 = vpop.f32.mrb[0].mxu0
        %v818 = vpop.f32.mrb[0].mxu0
        %v819 = vpop.f32.mrb[0].mxu0
        %820 = vdwg.mxu0
        %v822 = vsel %vm774, %v743, 0
        %v825 = vsel %vm774, %v755, 0
        %827 = vmatprep.subr.bf16.mxu0 0
        %828 = vmatpush1.bf16.xpose.msra.mxu0 %v825
        %829 = vmatprep.subr.bf16.mxu0 0
        %830 = vmatpush1.bf16.xpose.msra.mxu0 0
        %831 = vmatprep.subr.bf16.mxu0 0
        %832 = vmatpush1.bf16.xpose.msra.mxu0 0
        %833 = vmatprep.subr.bf16.mxu0 0
        %834 = vmatpush1.bf16.xpose.msra.mxu0 0
        %835 = vmatprep.subr.bf16.mxu0 0
        %836 = vmatpush1.bf16.xpose.msra.mxu0 0
        %837 = vmatprep.subr.bf16.mxu0 0
        %838 = vmatpush1.bf16.xpose.msra.mxu0 0
        %839 = vmatprep.subr.bf16.mxu0 0
        %840 = vmatpush1.bf16.xpose.msra.mxu0 0
        %841 = vmatprep.subr.bf16.mxu0 0
        %842 = vmatpush1.bf16.xpose.msra.mxu0 0
        %843 = vmatprep.subr.bf16.mxu0 0
        %844 = vmatpush1.bf16.xpose.msra.mxu0 0
        %845 = vmatprep.subr.bf16.mxu0 0
        %846 = vmatpush1.bf16.xpose.msra.mxu0 0
        %847 = vmatprep.subr.bf16.mxu0 0
        %848 = vmatpush1.bf16.xpose.msra.mxu0 0
        %849 = vmatprep.subr.bf16.mxu0 0
        %850 = vmatpush1.bf16.xpose.msra.mxu0 0
        %851 = vmatprep.subr.bf16.mxu0 0
        %852 = vmatpush1.bf16.xpose.msra.mxu0 0
        %853 = vmatprep.subr.bf16.mxu0 0
        %854 = vmatpush1.bf16.xpose.msra.mxu0 0
        %855 = vmatprep.subr.bf16.mxu0 0
        %856 = vmatpush1.bf16.xpose.msra.mxu0 0
        %857 = vmatprep.subr.bf16.mxu0 0
        %858 = vmatpush1.bf16.xpose.msra.mxu0 0
        %859 = vmatprep.mubr.bf16.mxu0 0
        %860 = vmatmul.mubr.bf16.gmra.mrb[0].mxu0 %v822
        %v861 = vpop.f32.mrb[0].mxu0
        %v862 = vadd.f32 0.0, %v861
        %v863 = vpop.f32.mrb[0].mxu0
        %v864 = vpop.f32.mrb[0].mxu0
        %v865 = vpop.f32.mrb[0].mxu0
        %866 = vdwg.mxu0
        %v868 = vsel %vm774, %v746, 0
        %v871 = vsel %vm774, %v758, 0
        %873 = vmatprep.subr.bf16.mxu0 0
        %874 = vmatpush1.bf16.xpose.msra.mxu0 %v871
        %875 = vmatprep.subr.bf16.mxu0 0
        %876 = vmatpush1.bf16.xpose.msra.mxu0 0
        %877 = vmatprep.subr.bf16.mxu0 0
        %878 = vmatpush1.bf16.xpose.msra.mxu0 0
        %879 = vmatprep.subr.bf16.mxu0 0
        %880 = vmatpush1.bf16.xpose.msra.mxu0 0
        %881 = vmatprep.subr.bf16.mxu0 0
        %882 = vmatpush1.bf16.xpose.msra.mxu0 0
        %883 = vmatprep.subr.bf16.mxu0 0
        %884 = vmatpush1.bf16.xpose.msra.mxu0 0
        %885 = vmatprep.subr.bf16.mxu0 0
        %886 = vmatpush1.bf16.xpose.msra.mxu0 0
        %887 = vmatprep.subr.bf16.mxu0 0
        %888 = vmatpush1.bf16.xpose.msra.mxu0 0
        %889 = vmatprep.subr.bf16.mxu0 0
        %890 = vmatpush1.bf16.xpose.msra.mxu0 0
        %891 = vmatprep.subr.bf16.mxu0 0
        %892 = vmatpush1.bf16.xpose.msra.mxu0 0
        %893 = vmatprep.subr.bf16.mxu0 0
        %894 = vmatpush1.bf16.xpose.msra.mxu0 0
        %895 = vmatprep.subr.bf16.mxu0 0
        %896 = vmatpush1.bf16.xpose.msra.mxu0 0
        %897 = vmatprep.subr.bf16.mxu0 0
        %898 = vmatpush1.bf16.xpose.msra.mxu0 0
        %899 = vmatprep.subr.bf16.mxu0 0
        %900 = vmatpush1.bf16.xpose.msra.mxu0 0
        %901 = vmatprep.subr.bf16.mxu0 0
        %902 = vmatpush1.bf16.xpose.msra.mxu0 0
        %903 = vmatprep.subr.bf16.mxu0 0
        %904 = vmatpush1.bf16.xpose.msra.mxu0 0
        %905 = vmatprep.mubr.bf16.mxu0 0
        %906 = vmatmul.mubr.bf16.gmra.mrb[0].mxu0 %v868
        %v907 = vpop.f32.mrb[0].mxu0
        %v908 = vadd.f32 0.0, %v907
        %v909 = vpop.f32.mrb[0].mxu0
        %v910 = vpop.f32.mrb[0].mxu0
        %v911 = vpop.f32.mrb[0].mxu0
        %912 = vdwg.mxu0
        %v914 = vsel %vm774, %v749, 0
        %v917 = vsel %vm774, %v761, 0
        %919 = vmatprep.subr.bf16.mxu0 0
        %920 = vmatpush1.bf16.xpose.msra.mxu0 %v917
        %921 = vmatprep.subr.bf16.mxu0 0
        %922 = vmatpush1.bf16.xpose.msra.mxu0 0
        %923 = vmatprep.subr.bf16.mxu0 0
        %924 = vmatpush1.bf16.xpose.msra.mxu0 0
        %925 = vmatprep.subr.bf16.mxu0 0
        %926 = vmatpush1.bf16.xpose.msra.mxu0 0
        %927 = vmatprep.subr.bf16.mxu0 0
        %928 = vmatpush1.bf16.xpose.msra.mxu0 0
        %929 = vmatprep.subr.bf16.mxu0 0
        %930 = vmatpush1.bf16.xpose.msra.mxu0 0
        %931 = vmatprep.subr.bf16.mxu0 0
        %932 = vmatpush1.bf16.xpose.msra.mxu0 0
        %933 = vmatprep.subr.bf16.mxu0 0
        %934 = vmatpush1.bf16.xpose.msra.mxu0 0
        %935 = vmatprep.subr.bf16.mxu0 0
        %936 = vmatpush1.bf16.xpose.msra.mxu0 0
        %937 = vmatprep.subr.bf16.mxu0 0
        %938 = vmatpush1.bf16.xpose.msra.mxu0 0
        %939 = vmatprep.subr.bf16.mxu0 0
        %940 = vmatpush1.bf16.xpose.msra.mxu0 0
        %941 = vmatprep.subr.bf16.mxu0 0
        %942 = vmatpush1.bf16.xpose.msra.mxu0 0
        %943 = vmatprep.subr.bf16.mxu0 0
        %944 = vmatpush1.bf16.xpose.msra.mxu0 0
        %945 = vmatprep.subr.bf16.mxu0 0
        %946 = vmatpush1.bf16.xpose.msra.mxu0 0
        %947 = vmatprep.subr.bf16.mxu0 0
        %948 = vmatpush1.bf16.xpose.msra.mxu0 0
        %949 = vmatprep.subr.bf16.mxu0 0
        %950 = vmatpush1.bf16.xpose.msra.mxu0 0
        %951 = vmatprep.mubr.bf16.mxu0 0
        %952 = vmatmul.mubr.bf16.gmra.mrb[0].mxu0 %v914
        %v953 = vpop.f32.mrb[0].mxu0
        %v954 = vadd.f32 0.0, %v953
        %v955 = vpop.f32.mrb[0].mxu0
        %v956 = vpop.f32.mrb[0].mxu0
        %v957 = vpop.f32.mrb[0].mxu0
        %958 = vdwg.mxu0
        %v959 = vsel %vm774, %v816, -inf
        %960 = vmax.xlane.f32.xlu0 %v959
        %v961 = vpop.xlane.xlu0 %960
        %v962 = vsel %vm774, %v862, -inf
        %963 = vmax.xlane.f32.xlu0 %v962
        %v964 = vpop.xlane.xlu0 %963
        %v965 = vsel %vm774, %v908, -inf
        %966 = vmax.xlane.f32.xlu0 %v965
        %v967 = vpop.xlane.xlu0 %966
        %v968 = vsel %vm774, %v954, -inf
        %969 = vmax.xlane.f32.xlu0 %v968
        %v970 = vpop.xlane.xlu0 %969
        %v971 = vsub.f32 %v816, %v961
        %v972 = vsub.f32 %v862, %v964
        %v973 = vsub.f32 %v908, %v967
        %v974 = vsub.f32 %v954, %v970
        %v975 = vmul.f32 %v971, 1.442695
        %v976 = vpow.pop %v975
        %v977 = vmul.f32 %v972, 1.442695
        %v978 = vpow.pop %v977
        %v979 = vmul.f32 %v973, 1.442695
        %v980 = vpow.pop %v979
        %v981 = vmul.f32 %v974, 1.442695
        %v982 = vpow.pop %v981
        %v983 = vsel %vm774, %v976, 0.0
        %984 = vadd.xlane.f32.xlu0 %v983
        %v985 = vpop.xlane.xlu0 %984
        %v986 = vsel %vm774, %v978, 0.0
        %987 = vadd.xlane.f32.xlu0 %v986
        %v988 = vpop.xlane.xlu0 %987
        %v989 = vsel %vm774, %v980, 0.0
        %990 = vadd.xlane.f32.xlu0 %v989
        %v991 = vpop.xlane.xlu0 %990
        %v992 = vsel %vm774, %v982, 0.0
        %993 = vadd.xlane.f32.xlu0 %v992
        %v994 = vpop.xlane.xlu0 %993
        %v995 = vrcp.pop %v985
        %v996 = vrcp.pop %v988
        %v997 = vrcp.pop %v991
        %v998 = vrcp.pop %v994
        %v999 = vmul.f32 %v976, %v995
        %v1000 = vmul.f32 %v978, %v996
        %v1001 = vmul.f32 %v980, %v997
        %v1002 = vmul.f32 %v982, %v998
        %v1003 = vpack.c.bf16 %v999, %v999
        %v1004 = vpack.c.bf16 %v1000, %v1000
        %v1005 = vpack.c.bf16 %v1001, %v1001
        %v1006 = vpack.c.bf16 %v1002, %v1002
        %v1008 = vsel %vm774, %v1003, 0
        %vm1010 = vcmask 1043456
        %v1012 = vsel %vm1010, %v764, 0
        %1014 = vmatprep.subr.bf16.mxu0 0
        %1015 = vmatpush1.bf16.msra.mxu0 %v1012
        %1016 = vmatprep.subr.bf16.mxu0 0
        %1017 = vmatpush1.bf16.msra.mxu0 0
        %1018 = vmatprep.subr.bf16.mxu0 0
        %1019 = vmatpush1.bf16.msra.mxu0 0
        %1020 = vmatprep.subr.bf16.mxu0 0
        %1021 = vmatpush1.bf16.msra.mxu0 0
        %1022 = vmatprep.subr.bf16.mxu0 0
        %1023 = vmatpush1.bf16.msra.mxu0 0
        %1024 = vmatprep.subr.bf16.mxu0 0
        %1025 = vmatpush1.bf16.msra.mxu0 0
        %1026 = vmatprep.subr.bf16.mxu0 0
        %1027 = vmatpush1.bf16.msra.mxu0 0
        %1028 = vmatprep.subr.bf16.mxu0 0
        %1029 = vmatpush1.bf16.msra.mxu0 0
        %1030 = vmatprep.subr.bf16.mxu0 0
        %1031 = vmatpush1.bf16.msra.mxu0 0
        %1032 = vmatprep.subr.bf16.mxu0 0
        %1033 = vmatpush1.bf16.msra.mxu0 0
        %1034 = vmatprep.subr.bf16.mxu0 0
        %1035 = vmatpush1.bf16.msra.mxu0 0
        %1036 = vmatprep.subr.bf16.mxu0 0
        %1037 = vmatpush1.bf16.msra.mxu0 0
        %1038 = vmatprep.subr.bf16.mxu0 0
        %1039 = vmatpush1.bf16.msra.mxu0 0
        %1040 = vmatprep.subr.bf16.mxu0 0
        %1041 = vmatpush1.bf16.msra.mxu0 0
        %1042 = vmatprep.subr.bf16.mxu0 0
        %1043 = vmatpush1.bf16.msra.mxu0 0
        %1044 = vmatprep.subr.bf16.mxu0 0
        %1045 = vmatpush1.bf16.msra.mxu0 0
        %1046 = vmatprep.mubr.bf16.mxu0 0
        %1047 = vmatmul.mubr.bf16.gmra.mrb[0].mxu0 %v1008
        %v1048 = vpop.f32.mrb[0].mxu0
        %v1049 = vadd.f32 0.0, %v1048
        %v1050 = vpop.f32.mrb[0].mxu0
        %v1051 = vpop.f32.mrb[0].mxu0
        %v1052 = vpop.f32.mrb[0].mxu0
        %1053 = vdwg.mxu0
        %v1055 = vsel %vm774, %v1004, 0
        %v1058 = vsel %vm1010, %v767, 0
        %1060 = vmatprep.subr.bf16.mxu0 0
        %1061 = vmatpush1.bf16.msra.mxu0 %v1058
        %1062 = vmatprep.subr.bf16.mxu0 0
        %1063 = vmatpush1.bf16.msra.mxu0 0
        %1064 = vmatprep.subr.bf16.mxu0 0
        %1065 = vmatpush1.bf16.msra.mxu0 0
        %1066 = vmatprep.subr.bf16.mxu0 0
        %1067 = vmatpush1.bf16.msra.mxu0 0
        %1068 = vmatprep.subr.bf16.mxu0 0
        %1069 = vmatpush1.bf16.msra.mxu0 0
        %1070 = vmatprep.subr.bf16.mxu0 0
        %1071 = vmatpush1.bf16.msra.mxu0 0
        %1072 = vmatprep.subr.bf16.mxu0 0
        %1073 = vmatpush1.bf16.msra.mxu0 0
        %1074 = vmatprep.subr.bf16.mxu0 0
        %1075 = vmatpush1.bf16.msra.mxu0 0
        %1076 = vmatprep.subr.bf16.mxu0 0
        %1077 = vmatpush1.bf16.msra.mxu0 0
        %1078 = vmatprep.subr.bf16.mxu0 0
        %1079 = vmatpush1.bf16.msra.mxu0 0
        %1080 = vmatprep.subr.bf16.mxu0 0
        %1081 = vmatpush1.bf16.msra.mxu0 0
        %1082 = vmatprep.subr.bf16.mxu0 0
        %1083 = vmatpush1.bf16.msra.mxu0 0
        %1084 = vmatprep.subr.bf16.mxu0 0
        %1085 = vmatpush1.bf16.msra.mxu0 0
        %1086 = vmatprep.subr.bf16.mxu0 0
        %1087 = vmatpush1.bf16.msra.mxu0 0
        %1088 = vmatprep.subr.bf16.mxu0 0
        %1089 = vmatpush1.bf16.msra.mxu0 0
        %1090 = vmatprep.subr.bf16.mxu0 0
        %1091 = vmatpush1.bf16.msra.mxu0 0
        %1092 = vmatprep.mubr.bf16.mxu0 0
        %1093 = vmatmul.mubr.bf16.gmra.mrb[0].mxu0 %v1055
        %v1094 = vpop.f32.mrb[0].mxu0
        %v1095 = vadd.f32 0.0, %v1094
        %v1096 = vpop.f32.mrb[0].mxu0
        %v1097 = vpop.f32.mrb[0].mxu0
        %v1098 = vpop.f32.mrb[0].mxu0
        %1099 = vdwg.mxu0
        %v1101 = vsel %vm774, %v1005, 0
        %v1104 = vsel %vm1010, %v770, 0
        %1106 = vmatprep.subr.bf16.mxu0 0
        %1107 = vmatpush1.bf16.msra.mxu0 %v1104
        %1108 = vmatprep.subr.bf16.mxu0 0
        %1109 = vmatpush1.bf16.msra.mxu0 0
        %1110 = vmatprep.subr.bf16.mxu0 0
        %1111 = vmatpush1.bf16.msra.mxu0 0
        %1112 = vmatprep.subr.bf16.mxu0 0
        %1113 = vmatpush1.bf16.msra.mxu0 0
        %1114 = vmatprep.subr.bf16.mxu0 0
        %1115 = vmatpush1.bf16.msra.mxu0 0
        %1116 = vmatprep.subr.bf16.mxu0 0
        %1117 = vmatpush1.bf16.msra.mxu0 0
        %1118 = vmatprep.subr.bf16.mxu0 0
        %1119 = vmatpush1.bf16.msra.mxu0 0
        %1120 = vmatprep.subr.bf16.mxu0 0
        %1121 = vmatpush1.bf16.msra.mxu0 0
        %1122 = vmatprep.subr.bf16.mxu0 0
        %1123 = vmatpush1.bf16.msra.mxu0 0
        %1124 = vmatprep.subr.bf16.mxu0 0
        %1125 = vmatpush1.bf16.msra.mxu0 0
        %1126 = vmatprep.subr.bf16.mxu0 0
        %1127 = vmatpush1.bf16.msra.mxu0 0
        %1128 = vmatprep.subr.bf16.mxu0 0
        %1129 = vmatpush1.bf16.msra.mxu0 0
        %1130 = vmatprep.subr.bf16.mxu0 0
        %1131 = vmatpush1.bf16.msra.mxu0 0
        %1132 = vmatprep.subr.bf16.mxu0 0
        %1133 = vmatpush1.bf16.msra.mxu0 0
        %1134 = vmatprep.subr.bf16.mxu0 0
        %1135 = vmatpush1.bf16.msra.mxu0 0
        %1136 = vmatprep.subr.bf16.mxu0 0
        %1137 = vmatpush1.bf16.msra.mxu0 0
        %1138 = vmatprep.mubr.bf16.mxu0 0
        %1139 = vmatmul.mubr.bf16.gmra.mrb[0].mxu0 %v1101
        %v1140 = vpop.f32.mrb[0].mxu0
        %v1141 = vadd.f32 0.0, %v1140
        %v1142 = vpop.f32.mrb[0].mxu0
        %v1143 = vpop.f32.mrb[0].mxu0
        %v1144 = vpop.f32.mrb[0].mxu0
        %1145 = vdwg.mxu0
        %v1147 = vsel %vm774, %v1006, 0
        %v1150 = vsel %vm1010, %v773, 0
        %1152 = vmatprep.subr.bf16.mxu0 0
        %1153 = vmatpush1.bf16.msra.mxu0 %v1150
        %1154 = vmatprep.subr.bf16.mxu0 0
        %1155 = vmatpush1.bf16.msra.mxu0 0
        %1156 = vmatprep.subr.bf16.mxu0 0
        %1157 = vmatpush1.bf16.msra.mxu0 0
        %1158 = vmatprep.subr.bf16.mxu0 0
        %1159 = vmatpush1.bf16.msra.mxu0 0
        %1160 = vmatprep.subr.bf16.mxu0 0
        %1161 = vmatpush1.bf16.msra.mxu0 0
        %1162 = vmatprep.subr.bf16.mxu0 0
        %1163 = vmatpush1.bf16.msra.mxu0 0
        %1164 = vmatprep.subr.bf16.mxu0 0
        %1165 = vmatpush1.bf16.msra.mxu0 0
        %1166 = vmatprep.subr.bf16.mxu0 0
        %1167 = vmatpush1.bf16.msra.mxu0 0
        %1168 = vmatprep.subr.bf16.mxu0 0
        %1169 = vmatpush1.bf16.msra.mxu0 0
        %1170 = vmatprep.subr.bf16.mxu0 0
        %1171 = vmatpush1.bf16.msra.mxu0 0
        %1172 = vmatprep.subr.bf16.mxu0 0
        %1173 = vmatpush1.bf16.msra.mxu0 0
        %1174 = vmatprep.subr.bf16.mxu0 0
        %1175 = vmatpush1.bf16.msra.mxu0 0
        %1176 = vmatprep.subr.bf16.mxu0 0
        %1177 = vmatpush1.bf16.msra.mxu0 0
        %1178 = vmatprep.subr.bf16.mxu0 0
        %1179 = vmatpush1.bf16.msra.mxu0 0
        %1180 = vmatprep.subr.bf16.mxu0 0
        %1181 = vmatpush1.bf16.msra.mxu0 0
        %1182 = vmatprep.subr.bf16.mxu0 0
        %1183 = vmatpush1.bf16.msra.mxu0 0
        %1184 = vmatprep.mubr.bf16.mxu0 0
        %1185 = vmatmul.mubr.bf16.gmra.mrb[0].mxu0 %v1147
        %v1186 = vpop.f32.mrb[0].mxu0
        %v1187 = vadd.f32 0.0, %v1186
        %v1188 = vpop.f32.mrb[0].mxu0
        %v1189 = vpop.f32.mrb[0].mxu0
        %v1190 = vpop.f32.mrb[0].mxu0
        %1191 = vdwg.mxu0
        %v1192 = vpack.c.bf16 %v1049, %v1049
        %v1194 = vunpack.c.l.s4 1983009808
        %v1195 = vunpack.c.0.s8 %v1194
        %v1196 = vlaneseq
        %v1197 = vshrl.u32 %v1196, 7
        %v1198 = vsub.s32 %v1195, %v1197
        %v1199 = vrot.slane %v1192, %v1198
        %v1200 = vpack.c.bf16 %v1141, %v1141
        %v1202 = vunpack.c.l.s4 1983009808
        %v1203 = vunpack.c.0.s8 %v1202
        %v1204 = vlaneseq
        %v1205 = vshrl.u32 %v1204, 7
        %v1206 = vsub.s32 %v1203, %v1205
        %v1207 = vrot.slane %v1200, %v1206
        %v1208 = vcombine.low %v1199, %v1207
        %v1209 = vcombine.high %v1199, %v1207
        %v1211 = vunpack.c.l.s4 1934713408
        %v1212 = vunpack.c.0.s8 %v1211
        %v1213 = vlaneseq
        %v1214 = vshrl.u32 %v1213, 7
        %v1215 = vsub.s32 %v1212, %v1214
        %v1216 = vrot.slane %v1208, %v1215
        %v1218 = vunpack.c.l.s4 1934713408
        %v1219 = vunpack.c.0.s8 %v1218
        %v1220 = vlaneseq
        %v1221 = vshrl.u32 %v1220, 7
        %v1222 = vsub.s32 %v1219, %v1221
        %v1223 = vrot.slane %v1209, %v1222
        %v1224 = vcombine.high %v1216, 0
        %v1225 = vcombine.high %v1223, 0
        %v1226 = vpack.c.bf16 %v1095, %v1095
        %v1228 = vunpack.c.l.s4 1983009808
        %v1229 = vunpack.c.0.s8 %v1228
        %v1230 = vlaneseq
        %v1231 = vshrl.u32 %v1230, 7
        %v1232 = vsub.s32 %v1229, %v1231
        %v1233 = vrot.slane %v1226, %v1232
        %v1234 = vpack.c.bf16 %v1187, %v1187
        %v1236 = vunpack.c.l.s4 1983009808
        %v1237 = vunpack.c.0.s8 %v1236
        %v1238 = vlaneseq
        %v1239 = vshrl.u32 %v1238, 7
        %v1240 = vsub.s32 %v1237, %v1239
        %v1241 = vrot.slane %v1234, %v1240
        %v1242 = vcombine.low %v1233, %v1241
        %v1243 = vcombine.high %v1233, %v1241
        %v1245 = vunpack.c.l.s4 1934713408
        %v1246 = vunpack.c.0.s8 %v1245
        %v1247 = vlaneseq
        %v1248 = vshrl.u32 %v1247, 7
        %v1249 = vsub.s32 %v1246, %v1248
        %v1250 = vrot.slane %v1242, %v1249
        %v1252 = vunpack.c.l.s4 1934713408
        %v1253 = vunpack.c.0.s8 %v1252
        %v1254 = vlaneseq
        %v1255 = vshrl.u32 %v1254, 7
        %v1256 = vsub.s32 %v1253, %v1255
        %v1257 = vrot.slane %v1243, %v1256
        %v1258 = vcombine.high %v1250, 0
        %v1259 = vcombine.high %v1257, 0
        %v1262 = vpack.i.b16 %v1250, %v1216
        %v1264 = vshrl.u32 %v1216, 16
        %v1265 = vshrl.u32 %v1250, 16
        %v1266 = vpack.i.b16 %v1265, %v1264
        %v1270 = vpack.i.b16 %v1258, %v1224
        %v1272 = vshrl.u32 %v1224, 16
        %v1273 = vshrl.u32 %v1258, 16
        %v1274 = vpack.i.b16 %v1273, %v1272
        %v1278 = vpack.i.b16 %v1257, %v1223
        %v1280 = vshrl.u32 %v1223, 16
        %v1281 = vshrl.u32 %v1257, 16
        %v1282 = vpack.i.b16 %v1281, %v1280
        %v1286 = vpack.i.b16 %v1259, %v1225
        %v1288 = vshrl.u32 %v1225, 16
        %v1289 = vshrl.u32 %v1259, 16
        %v1290 = vpack.i.b16 %v1289, %v1288
        %v1292 = vcombine.low %v1262, %v1278
        %v1294 = vunpack.c.l.s4 1983009808
        %v1295 = vunpack.c.0.s8 %v1294
        %v1296 = vlaneseq
        %v1297 = vshrl.u32 %v1296, 7
        %v1298 = vsub.s32 %v1295, %v1297
        %v1299 = vrot.slane %v1292, %v1298
        %v1300 = vcombine.low %v1270, %v1286
        %v1302 = vunpack.c.l.s4 1983009808
        %v1303 = vunpack.c.0.s8 %v1302
        %v1304 = vlaneseq
        %v1305 = vshrl.u32 %v1304, 7
        %v1306 = vsub.s32 %v1303, %v1305
        %v1307 = vrot.slane %v1300, %v1306
        %v1308 = vcombine.low %v1299, %v1307
        %v1310 = vunpack.c.l.s4 1934713408
        %v1311 = vunpack.c.0.s8 %v1310
        %v1312 = vlaneseq
        %v1313 = vshrl.u32 %v1312, 7
        %v1314 = vsub.s32 %v1311, %v1313
        %v1315 = vrot.slane %v1308, %v1314
        %v1316 = vcombine.high %v1315, 0
        %v1317 = vcombine.low %v1266, %v1282
        %v1319 = vunpack.c.l.s4 1983009808
        %v1320 = vunpack.c.0.s8 %v1319
        %v1321 = vlaneseq
        %v1322 = vshrl.u32 %v1321, 7
        %v1323 = vsub.s32 %v1320, %v1322
        %v1324 = vrot.slane %v1317, %v1323
        %v1325 = vcombine.low %v1274, %v1290
        %v1327 = vunpack.c.l.s4 1983009808
        %v1328 = vunpack.c.0.s8 %v1327
        %v1329 = vlaneseq
        %v1330 = vshrl.u32 %v1329, 7
        %v1331 = vsub.s32 %v1328, %v1330
        %v1332 = vrot.slane %v1325, %v1331
        %v1333 = vcombine.low %v1324, %v1332
        %v1335 = vunpack.c.l.s4 1934713408
        %v1336 = vunpack.c.0.s8 %v1335
        %v1337 = vlaneseq
        %v1338 = vshrl.u32 %v1337, 7
        %v1339 = vsub.s32 %v1336, %v1338
        %v1340 = vrot.slane %v1333, %v1339
        %v1341 = vcombine.high %v1340, 0
        %v1344 = vpack.i.b16 %v1340, %v1315
        %v1345 = vshrl.u32 %v1315, 16
        %v1346 = vshrl.u32 %v1340, 16
        %v1347 = vpack.i.b16 %v1346, %v1345
        %v1350 = vpack.i.b16 %v1341, %v1316
        %v1351 = vshrl.u32 %v1316, 16
        %v1352 = vshrl.u32 %v1341, 16
        %v1353 = vpack.i.b16 %v1352, %v1351
        %1354 = vrot.lane.b32.xlu0 %v1347, 8
        %v1355 = vpop.permute.xlu0 %1354
        %1356 = vrot.lane.b32.xlu0 %v1350, 16
        %v1357 = vpop.permute.xlu0 %1356
        %1358 = vrot.lane.b32.xlu0 %v1353, 24
        %v1359 = vpop.permute.xlu0 %1358
        %v1362 = vsel %vm774, %v1344, %v1355
        %vm1363 = vcmask 130048
        %v1365 = vsel %vm1363, %v1362, %v1357
        %vm1366 = vcmask 195584
        %v1368 = vsel %vm1366, %v1365, %v1359
        %v1369 = vld [vmem:[%s5] sm:$0xf]
        %v1370 = vld [vmem:[%s5 + $0x4] sm:$0xf]
        %v1371 = vld [vmem:[%s5 + $0x8] sm:$0xf]
        %v1372 = vld [vmem:[%s5 + $0xc] sm:$0xf]
        %v1373 = vld [vmem:[%s6] sm:$0x1]
        %v1375 = vlaneseq
        %v1376 = vshrl.u32 %v1375, 7
        %v1377 = vsub.s32 0, %v1376
        %v1378 = vrot.slane %v1373, %v1377
        %v1384 = vunpack.c.l.b16 %v1369
        %v1385 = vunpack.c.l.b16 %v1370
        %v1386 = vunpack.c.l.b16 %v1371
        %v1387 = vunpack.c.l.b16 %v1372
        %v1388 = vpack.c.b16 %v1385, %v1384
        %v1389 = vpack.c.b16 %v1387, %v1386
        %v1392 = vsel %vm325, %v1368, 0
        %1394 = vmatprep.subr.bf16.mxu0 0
        %1395 = vmatpush1.bf16.msra.mxu0 %v1388
        %1396 = vmatprep.subr.bf16.mxu0 0
        %1397 = vmatpush1.bf16.msra.mxu0 %v1389
        %1398 = vmatprep.subr.bf16.mxu0 0
        %1399 = vmatpush1.bf16.msra.mxu0 0
        %1400 = vmatprep.subr.bf16.mxu0 0
        %1401 = vmatpush1.bf16.msra.mxu0 0
        %1402 = vmatprep.subr.bf16.mxu0 0
        %1403 = vmatpush1.bf16.msra.mxu0 0
        %1404 = vmatprep.subr.bf16.mxu0 0
        %1405 = vmatpush1.bf16.msra.mxu0 0
        %1406 = vmatprep.subr.bf16.mxu0 0
        %1407 = vmatpush1.bf16.msra.mxu0 0
        %1408 = vmatprep.subr.bf16.mxu0 0
        %1409 = vmatpush1.bf16.msra.mxu0 0
        %1410 = vmatprep.subr.bf16.mxu0 0
        %1411 = vmatpush1.bf16.msra.mxu0 0
        %1412 = vmatprep.subr.bf16.mxu0 0
        %1413 = vmatpush1.bf16.msra.mxu0 0
        %1414 = vmatprep.subr.bf16.mxu0 0
        %1415 = vmatpush1.bf16.msra.mxu0 0
        %1416 = vmatprep.subr.bf16.mxu0 0
        %1417 = vmatpush1.bf16.msra.mxu0 0
        %1418 = vmatprep.subr.bf16.mxu0 0
        %1419 = vmatpush1.bf16.msra.mxu0 0
        %1420 = vmatprep.subr.bf16.mxu0 0
        %1421 = vmatpush1.bf16.msra.mxu0 0
        %1422 = vmatprep.subr.bf16.mxu0 0
        %1423 = vmatpush1.bf16.msra.mxu0 0
        %1424 = vmatprep.subr.bf16.mxu0 0
        %1425 = vmatpush1.bf16.msra.mxu0 0
        %1426 = vmatprep.mubr.bf16.mxu0 0
        %1427 = vmatmul.mubr.bf16.gmra.mrb[0].mxu0 %v1392
        %v1428 = vpop.f32.mrb[0].mxu0
        %v1429 = vadd.f32 %v1378, %v1428
        %v1430 = vpop.f32.mrb[0].mxu0
        %v1431 = vpop.f32.mrb[0].mxu0
        %v1432 = vpop.f32.mrb[0].mxu0
        %1433 = vdwg.mxu0
        %v1434 = vadd.f32 %v322, %v1429
        %1435 = vst.msk [vmem:[%s320] sm:$0xff] %vm325, %v1434
        %s1436 = sand.u32 %s185, 1
        %s1437 = scalar_lea.sflag [#allocation4], %s1436
        %s1438 = sand.u32 %s185, 1
        %s1439 = smul.addr %s1438, 8
        %s1440 = scalar_lea.vmem [#allocation8], %s1439
        // Predicated region
        $region61: #{tpu_custom_call.1} parent=47 // pred_check
          %p1441 = pneg %p195
        $region62: #{tpu_custom_call.1} parent=47 // pred_check_branch
          %1443 = sbr.rel (%p1441) target = $region64
        $region63: #{tpu_custom_call.1} parent=47 // pred_region
          %s1445 = ssub.s32 128, 128
          %1446 = vsyncadd %s1437, %s1445
          %s1447 = smul.addr %s25, 128
          %s1448 = scalar_lea.hbm %s7, %s1447
          %s1450 = sshll.u32 %s1440, 4
          %s1451 = int_to_ptr.vmem [resolvable:$true] %s1450
          %1453 = dma.vmem_to_hbm [thread:$0]  %s1451, 128, %s1448, %s1437
        $region64: #{tpu_custom_call.1} parent=47 // pred_fallthru
          _
      $region48: #{tpu_custom_call.1} parent=5 // pred_fallthru
        _
      %p1454 = scmp.le.s32.totalorder 2, %s20
      // Predicated region
      $region65: #{tpu_custom_call.1} parent=5 // pred_check
        %p1455 = pneg %p1454
      $region66: #{tpu_custom_call.1} parent=5 // pred_check_branch
        %1457 = sbr.rel (%p1455) target = $region68
      $region67: #{tpu_custom_call.1} parent=5 // pred_region
        %s1458 = ssub.s32 %s20, 2
        // Predicated region
        $region69: #{tpu_custom_call.1} parent=67 // pred_check
          %p1459 = pneg %p201
        $region70: #{tpu_custom_call.1} parent=67 // pred_check_branch
          %1461 = sbr.rel (%p1459) target = $region72
        $region71: #{tpu_custom_call.1} parent=67 // pred_region
          %s1462 = sand.u32 %s186, 1
          %s1463 = scalar_lea.sflag [#allocation4], %s1462
          %s1464 = sand.u32 %s186, 1
          %s1465 = smul.addr %s1464, 8
          %s1466 = scalar_lea.vmem [#allocation8], %s1465
          %1467 = dma.done %s1463, 128
        $region72: #{tpu_custom_call.1} parent=67 // pred_fallthru
          _
      $region68: #{tpu_custom_call.1} parent=5 // pred_fallthru
        _
    $region6: #{tpu_custom_call.1} parent=1 // loop_footer
      %s24 = sadd.s32 1, %s20
    $region7: #{tpu_custom_call.1} parent=1 // loop_footer_branch
      %19 = sbr.rel target = $region3
    $region8: #{tpu_custom_call.1} parent=1 // loop_exit
      _
    %1468 = vsyncpa [#allocation3], 1
    %s1469 = scalar_lea.sflag [#allocation3], 1
    %1470 = vsyncpa %s1469, 1
    %1471 = vsyncpa [#allocation6], 1
    %1472 = vsyncpa [#allocation4], 1
    %s1473 = scalar_lea.sflag [#allocation4], 1
    %1474 = vsyncpa %s1473, 1

</llo_original>
